<compile_context>
chip_gen: v6e
topology: v6e:2x2x1
jax: 0.10.0
libtpu: 0.0.40
codegen_flags: <defaults>
</compile_context>

<pallas_src>
import functools
import math

import jax
import jax.numpy as jnp
from jax.experimental import pallas as pl
from jax.experimental.pallas import tpu as pltpu

# ---------------- model config (small synthetic, lane-dense dims) ----------------
VOCAB      = 256
HIDDEN     = 128                      # multiple of 128 -> lane-dense residual stream
N_LAYERS   = 2
N_HEADS    = 4
N_KV_HEADS = 2
HEAD_DIM   = HIDDEN // N_HEADS        # 32
FFN        = 256
ROPE_BASE  = 10000.0
RMS_EPS    = 1e-5

Q_DIM   = N_HEADS * HEAD_DIM                       # 128
KV_DIM  = N_KV_HEADS * HEAD_DIM                    # 64
QK_DIM  = Q_DIM + KV_DIM                           # 192 (q + k, both get RoPE)
QKV_DIM = Q_DIM + 2 * KV_DIM                       # 256 (packed q|k|v projection)
N_REP   = N_HEADS // N_KV_HEADS


# ---------------- fused decoder-stack kernel ------------------------------------

def _stack_kernel(h_ref, an_ref, fn_ref, wqkv_ref, wo_ref, w13_ref, w2_ref,
                  rr_ref, cos_ref, sin_ref, nw_ref, wlm_ref,
                  logits_ref, hbuf):
    """grid = (batch, layer). One full decoder layer per step; the residual
    stream is carried across the layer axis in the VMEM scratch `hbuf`.
    At the last layer the final RMSNorm + lm_head are fused in as well."""
    layer = pl.program_id(1)
    S = h_ref.shape[0]

    # layer 0: load the embedding block into the VMEM-resident residual stream
    @pl.when(layer == 0)
    def _():
        hbuf[...] = h_ref[...]

    h = hbuf[...]                                              # [S, HIDDEN] f32

    # ---- attention sub-block: RMSNorm -> QKV -> RoPE -> causal GQA -> Wo -------
    var = jnp.mean(h * h, axis=-1, keepdims=True)
    x = (h * jax.lax.rsqrt(var + RMS_EPS)) * an_ref[...]
    xb = x.astype(jnp.bfloat16)

    qkv = jnp.dot(xb, wqkv_ref[...],
                  preferred_element_type=jnp.float32)          # [S, QKV_DIM]
    qk = qkv[:, :QK_DIM]                                       # [S, 192] (q | k)
    v = qkv[:, QK_DIM:]                                        # [S, 64]

    # RoPE: rotate_half expressed as one block-diagonal matmul (per-head
    # [[0, I],[-I, 0]] blocks) -> no lane shuffles; cos/sin pre-tiled per head.
    rot = jnp.dot(qk, rr_ref[...], preferred_element_type=jnp.float32)
    qk = qk * cos_ref[...] + rot * sin_ref[...]
    q = qk[:, :Q_DIM]                                          # [S, 128]
    k = qk[:, Q_DIM:]                                          # [S, 64]

    scale = 1.0 / math.sqrt(HEAD_DIM)
    row = jax.lax.broadcasted_iota(jnp.int32, (S, S), 0)
    col = jax.lax.broadcasted_iota(jnp.int32, (S, S), 1)
    causal = col <= row

    wo = wo_ref[...]                                           # [Q_DIM, HIDDEN] bf16
    attn_out = h                                               # residual fused in
    for hd in range(N_HEADS):
        kv = hd // N_REP                                       # zero-copy GQA
        qh = q[:, hd * HEAD_DIM:(hd + 1) * HEAD_DIM].astype(jnp.bfloat16)
        kh = k[:, kv * HEAD_DIM:(kv + 1) * HEAD_DIM].astype(jnp.bfloat16)
        vh = v[:, kv * HEAD_DIM:(kv + 1) * HEAD_DIM].astype(jnp.bfloat16)

        s = jax.lax.dot_general(qh, kh, (((1,), (1,)), ((), ())),
                                preferred_element_type=jnp.float32) * scale
        s = jnp.where(causal, s, jnp.float32(-1e30))
        m = jnp.max(s, axis=-1, keepdims=True)                 # softmax stats f32
        p = jnp.exp(s - m)
        lsum = jnp.sum(p, axis=-1, keepdims=True)
        o = jnp.dot(p.astype(jnp.bfloat16), vh,
                    preferred_element_type=jnp.float32)
        o = o * pl.reciprocal(lsum, approx=True)               # EUP vrcp

        # fold output projection + residual: attn_out += o_h @ Wo[h-rows]
        attn_out = attn_out + jnp.dot(
            o.astype(jnp.bfloat16),
            wo[hd * HEAD_DIM:(hd + 1) * HEAD_DIM, :],
            preferred_element_type=jnp.float32)

    # ---- MLP sub-block: RMSNorm -> SwiGLU -> down proj + residual --------------
    var2 = jnp.mean(attn_out * attn_out, axis=-1, keepdims=True)
    x2 = ((attn_out * jax.lax.rsqrt(var2 + RMS_EPS)) * fn_ref[...]).astype(jnp.bfloat16)
    gu = jnp.dot(x2, w13_ref[...], preferred_element_type=jnp.float32)   # [S, 2*FFN]
    g = gu[:, :FFN]
    u = gu[:, FFN:]
    act = (g * jax.nn.sigmoid(g)) * u
    h_new = attn_out + jnp.dot(act.astype(jnp.bfloat16), w2_ref[...],
                               preferred_element_type=jnp.float32)
    hbuf[...] = h_new                                          # carry to next layer

    # ---- last layer: fused final RMSNorm + lm_head -----------------------------
    @pl.when(layer == pl.num_programs(1) - 1)
    def _():
        var3 = jnp.mean(h_new * h_new, axis=-1, keepdims=True)
        x3 = ((h_new * jax.lax.rsqrt(var3 + RMS_EPS)) * nw_ref[...]).astype(jnp.bfloat16)
        logits_ref[...] = jnp.dot(x3, wlm_ref[...],
                                  preferred_element_type=jnp.float32)


def decoder_stack(params, h, rope_r, cos_qk, sin_qk, B, S):
    """h: [B*S, HIDDEN] f32 -> logits [B*S, VOCAB] f32 in a single pallas_call."""
    return pl.pallas_call(
        _stack_kernel,
        out_shape=jax.ShapeDtypeStruct((B * S, VOCAB), jnp.float32),
        grid=(B, N_LAYERS),
        in_specs=[
            pl.BlockSpec((S, HIDDEN), lambda b, l: (b, 0)),                # h (embeddings)
            pl.BlockSpec((None, 1, HIDDEN), lambda b, l: (l, 0, 0)),       # attn_norm[l]
            pl.BlockSpec((None, 1, HIDDEN), lambda b, l: (l, 0, 0)),       # ffn_norm[l]
            pl.BlockSpec((None, HIDDEN, QKV_DIM), lambda b, l: (l, 0, 0)), # wqkv[l]
            pl.BlockSpec((None, Q_DIM, HIDDEN), lambda b, l: (l, 0, 0)),   # wo[l]
            pl.BlockSpec((None, HIDDEN, 2 * FFN), lambda b, l: (l, 0, 0)), # w13[l]
            pl.BlockSpec((None, FFN, HIDDEN), lambda b, l: (l, 0, 0)),     # w2[l]
            pl.BlockSpec((QK_DIM, QK_DIM), lambda b, l: (0, 0)),           # rotate_half mat
            pl.BlockSpec((S, QK_DIM), lambda b, l: (0, 0)),                # cos (per-head tiled)
            pl.BlockSpec((S, QK_DIM), lambda b, l: (0, 0)),                # sin
            pl.BlockSpec((1, HIDDEN), lambda b, l: (0, 0)),                # final norm
            pl.BlockSpec((HIDDEN, VOCAB), lambda b, l: (0, 0)),            # lm_head
        ],
        out_specs=pl.BlockSpec((S, VOCAB), lambda b, l: (b, 0)),
        scratch_shapes=[pltpu.VMEM((S, HIDDEN), jnp.float32)],             # residual stream
        compiler_params=pltpu.CompilerParams(
            dimension_semantics=("parallel", "arbitrary")),
    )(h,
      params["attn_norm"], params["ffn_norm"],
      params["wqkv"], params["wo"], params["w13"], params["w2"],
      rope_r, cos_qk, sin_qk,
      params["norm"].reshape(1, HIDDEN), params["lm_head"])


# ---------------- glue: RoPE tables, params, forward -----------------------------

def _rope_tables(seq_len, dim, base=ROPE_BASE):
    inv_freq = 1.0 / (base ** (jnp.arange(0, dim, 2, dtype=jnp.float32) / dim))
    t = jnp.arange(seq_len, dtype=jnp.float32)
    freqs = jnp.outer(t, inv_freq)                       # [S, dim/2]
    emb = jnp.concatenate([freqs, freqs], axis=-1)       # [S, dim]  (HF convention)
    return jnp.cos(emb), jnp.sin(emb)


def _rotate_half_matrix(dim):
    """R such that x @ R == rotate_half(x) == [-x2, x1] (HF convention)."""
    half = dim // 2
    z = jnp.zeros((half, half), jnp.float32)
    eye = jnp.eye(half, dtype=jnp.float32)
    return jnp.concatenate([jnp.concatenate([z, eye], axis=1),
                            jnp.concatenate([-eye, z], axis=1)], axis=0)


def _rope_inputs(S):
    cos, sin = _rope_tables(S, HEAD_DIM)                          # [S, HEAD_DIM]
    n_blocks = QK_DIM // HEAD_DIM                                 # q heads + kv heads
    cos_qk = jnp.tile(cos, (1, n_blocks))                         # [S, QK_DIM]
    sin_qk = jnp.tile(sin, (1, n_blocks))
    rope_r = jnp.kron(jnp.eye(n_blocks, dtype=jnp.float32),
                      _rotate_half_matrix(HEAD_DIM))              # [QK_DIM, QK_DIM]
    return rope_r, cos_qk, sin_qk


def init_params(key):
    def nrm(k, shape):
        return (0.02 * jax.random.normal(k, shape, dtype=jnp.float32)).astype(jnp.bfloat16)

    k_emb, k_lm, k_qkv, k_wo, k_w13, k_w2 = jax.random.split(key, 6)
    # per-layer weights stacked along a leading layer dim (selected by the grid).
    return {
        "tok_emb": nrm(k_emb, (VOCAB, HIDDEN)),
        "lm_head": nrm(k_lm, (HIDDEN, VOCAB)),        # stored transposed for x @ W
        "norm": jnp.ones((HIDDEN,), jnp.float32),
        "attn_norm": jnp.ones((N_LAYERS, 1, HIDDEN), jnp.float32),
        "ffn_norm":  jnp.ones((N_LAYERS, 1, HIDDEN), jnp.float32),
        "wqkv": nrm(k_qkv, (N_LAYERS, HIDDEN, QKV_DIM)),   # packed q|k|v
        "wo":   nrm(k_wo,  (N_LAYERS, Q_DIM, HIDDEN)),
        "w13":  nrm(k_w13, (N_LAYERS, HIDDEN, 2 * FFN)),   # packed gate|up
        "w2":   nrm(k_w2,  (N_LAYERS, FFN, HIDDEN)),
    }


@functools.partial(jax.jit, static_argnums=())
def transformer_forward(params, tokens):
    """Equivalent of Transformer.forward(examples, image=None) -> logits [B, S, VOCAB]."""
    B, S = tokens.shape

    # token embedding gather stays in XLA glue
    # TODO(synk): a Pallas scalar-prefetch row-gather kernel for the embedding
    # only pays off at real vocab sizes; at toy dims XLA's gather is fine.
    h = jnp.take(params["tok_emb"], tokens, axis=0).astype(jnp.float32)
    h = h.reshape(B * S, HIDDEN)

    rope_r, cos_qk, sin_qk = _rope_inputs(S)

    logits = decoder_stack(params, h, rope_r, cos_qk, sin_qk, B, S)
    # image_words == 0 -> logits[:, 0:, :] is the full tensor
    return logits.reshape(B, S, VOCAB)


# TODO(synk): the with_visual=True path (open_clip ConvNeXt-XXL, DINOv2 ViT-g,
# bicubic interpolation, dist.all_gather) is a frozen external vision stack and
# is not reproduced here; only the text forward path is implemented.
# TODO(synk): at real InternLM2-7B dimensions (hidden=4096, S up to 4096) the
# per-layer body must switch to K/N-tiled matmuls with f32 VMEM accumulators and
# flash-style online-softmax attention over KV tiles (v7x has only 64 MiB VMEM);
# the toy dims here fit a single tile per grid step.

if __name__ == "__main__":
    key = jax.random.PRNGKey(0)
    pkey, tkey = jax.random.split(key)
    params = init_params(pkey)

    B, S = 2, 8
    tokens = jax.random.randint(tkey, (B, S), 0, VOCAB, dtype=jnp.int32)

    logits = transformer_forward(params, tokens)
    jax.block_until_ready(logits)
    assert logits.shape == (B, S, VOCAB) and logits.dtype == jnp.float32
    assert bool(jnp.all(jnp.isfinite(logits)))
    print("KERNEL_OK")
</pallas_src>

<mosaic_0001>
module attributes {stable_mosaic.version = 11 : i64} {
  func.func @_stack_kernel(%arg0: i32, %arg1: i32, %arg2: memref<8x128xf32, #tpu.memory_space<vmem>>, %arg3: memref<1x1x128xf32, #tpu.memory_space<vmem>>, %arg4: memref<1x1x128xf32, #tpu.memory_space<vmem>>, %arg5: memref<1x128x256xbf16, #tpu.memory_space<vmem>>, %arg6: memref<1x128x128xbf16, #tpu.memory_space<vmem>>, %arg7: memref<1x128x512xbf16, #tpu.memory_space<vmem>>, %arg8: memref<1x256x128xbf16, #tpu.memory_space<vmem>>, %arg9: memref<192x192xf32, #tpu.memory_space<vmem>>, %arg10: memref<8x192xf32, #tpu.memory_space<vmem>>, %arg11: memref<8x192xf32, #tpu.memory_space<vmem>>, %arg12: memref<1x128xf32, #tpu.memory_space<vmem>>, %arg13: memref<128x256xbf16, #tpu.memory_space<vmem>>, %arg14: memref<8x256xf32, #tpu.memory_space<vmem>>, %arg15: memref<8x128xf32, #tpu.memory_space<vmem>>) attributes {dimension_semantics = [#tpu.dimension_semantics<parallel>, #tpu.dimension_semantics<arbitrary>], iteration_bounds = array<i64: 2, 2>, scalar_prefetch = 0 : i64, scratch_operands = 1 : i64, tpu.core_type = #tpu.core_type<tc>, window_params = [{transform_indices = @transform_0, window_bounds = array<i64: 8, 128>}, {transform_indices = @transform_1, window_bounds = array<i64: 1, 1, 128>}, {transform_indices = @transform_2, window_bounds = array<i64: 1, 1, 128>}, {transform_indices = @transform_3, window_bounds = array<i64: 1, 128, 256>}, {transform_indices = @transform_4, window_bounds = array<i64: 1, 128, 128>}, {transform_indices = @transform_5, window_bounds = array<i64: 1, 128, 512>}, {transform_indices = @transform_6, window_bounds = array<i64: 1, 256, 128>}, {pipeline_mode = #tpu.pipeline_mode<synchronous>, transform_indices = @transform_7, window_bounds = array<i64: 192, 192>}, {pipeline_mode = #tpu.pipeline_mode<synchronous>, transform_indices = @transform_8, window_bounds = array<i64: 8, 192>}, {pipeline_mode = #tpu.pipeline_mode<synchronous>, transform_indices = @transform_9, window_bounds = array<i64: 8, 192>}, {pipeline_mode = #tpu.pipeline_mode<synchronous>, transform_indices = @transform_10, window_bounds = array<i64: 1, 128>}, {pipeline_mode = #tpu.pipeline_mode<synchronous>, transform_indices = @transform_11, window_bounds = array<i64: 128, 256>}, {transform_indices = @transform_12, window_bounds = array<i64: 8, 256>}]} {
    %c0_i32 = arith.constant 0 : i32
    %0 = arith.cmpi eq, %arg1, %c0_i32 : i32
    %1 = arith.extui %0 : i1 to i32
    %c0_i32_0 = arith.constant 0 : i32
    %2 = arith.cmpi ne, %1, %c0_i32_0 : i32
    scf.if %2 {
      %c0_67 = arith.constant 0 : index
      %c0_68 = arith.constant 0 : index
      %182 = vector.load %arg2[%c0_67, %c0_68] : memref<8x128xf32, #tpu.memory_space<vmem>>, vector<8x128xf32>
      %c0_69 = arith.constant 0 : index
      %c0_70 = arith.constant 0 : index
      %183 = vector.load %arg15[%c0_69, %c0_70] : memref<8x128xf32, #tpu.memory_space<vmem>>, vector<8x128xf32>
      tpu.vector_store %arg15[%c0_69, %c0_70], %182 {strides = array<i32>} : memref<8x128xf32, #tpu.memory_space<vmem>>, vector<8x128xf32>,
    } else {
    }
    %c0 = arith.constant 0 : index
    %c0_1 = arith.constant 0 : index
    %3 = vector.load %arg15[%c0, %c0_1] : memref<8x128xf32, #tpu.memory_space<vmem>>, vector<8x128xf32>
    %4 = arith.mulf %3, %3 : vector<8x128xf32>
    %cst = arith.constant dense<0.000000e+00> : vector<8xf32>
    %5 = vector.multi_reduction <add>, %4, %cst [1] : vector<8x128xf32> to vector<8xf32>
    %6 = vector.shape_cast %5 : vector<8xf32> to vector<8x1xf32>
    %cst_2 = arith.constant 1.280000e+02 : f32
    %7 = vector.broadcast %cst_2 : f32 to vector<8x1xf32>
    %8 = arith.divf %6, %7 : vector<8x1xf32>
    %cst_3 = arith.constant 9.99999974E-6 : f32
    %9 = vector.broadcast %cst_3 : f32 to vector<8x1xf32>
    %10 = arith.addf %8, %9 : vector<8x1xf32>
    %11 = math.rsqrt %10 : vector<8x1xf32>
    %12 = vector.broadcast %11 : vector<8x1xf32> to vector<8x128xf32>
    %13 = arith.mulf %3, %12 : vector<8x128xf32>
    %c0_4 = arith.constant 0 : index
    %c0_5 = arith.constant 0 : index
    %c0_6 = arith.constant 0 : index
    %14 = vector.load %arg3[%c0_4, %c0_5, %c0_6] : memref<1x1x128xf32, #tpu.memory_space<vmem>>, vector<1x1x128xf32>
    %15 = vector.shape_cast %14 : vector<1x1x128xf32> to vector<1x128xf32>
    %16 = vector.broadcast %15 : vector<1x128xf32> to vector<8x128xf32>
    %17 = arith.mulf %13, %16 : vector<8x128xf32>
    %18 = arith.truncf %17 : vector<8x128xf32> to vector<8x128xbf16>
    %c0_7 = arith.constant 0 : index
    %c0_8 = arith.constant 0 : index
    %c0_9 = arith.constant 0 : index
    %19 = vector.load %arg5[%c0_7, %c0_8, %c0_9] : memref<1x128x256xbf16, #tpu.memory_space<vmem>>, vector<1x128x256xbf16>
    %20 = vector.shape_cast %19 : vector<1x128x256xbf16> to vector<128x256xbf16>
    %cst_10 = arith.constant dense<0.000000e+00> : vector<8x256xf32>
    %21 = tpu.matmul %18, %20, %cst_10 {dimension_numbers = #tpu.dot_dimension_numbers<[1], [0], [0], [1], [0, 0, 1, 1], [], []>} : vector<8x128xbf16>, vector<128x256xbf16>, vector<8x256xf32> -> vector<8x256xf32>
    %22 = vector.extract_strided_slice %21 {offsets = [0, 0], sizes = [8, 192], strides = [1, 1]} : vector<8x256xf32> to vector<8x192xf32>
    %23 = vector.extract_strided_slice %21 {offsets = [0, 192], sizes = [8, 64], strides = [1, 1]} : vector<8x256xf32> to vector<8x64xf32>
    %c0_11 = arith.constant 0 : index
    %c0_12 = arith.constant 0 : index
    %24 = vector.load %arg9[%c0_11, %c0_12] : memref<192x192xf32, #tpu.memory_space<vmem>>, vector<192x192xf32>
    %cst_13 = arith.constant dense<0.000000e+00> : vector<8x192xf32>
    %25 = tpu.matmul %22, %24, %cst_13 {dimension_numbers = #tpu.dot_dimension_numbers<[1], [0], [0], [1], [0, 0, 1, 1], [], []>} : vector<8x192xf32>, vector<192x192xf32>, vector<8x192xf32> -> vector<8x192xf32>
    %c0_14 = arith.constant 0 : index
    %c0_15 = arith.constant 0 : index
    %26 = vector.load %arg10[%c0_14, %c0_15] : memref<8x192xf32, #tpu.memory_space<vmem>>, vector<8x192xf32>
    %27 = arith.mulf %22, %26 : vector<8x192xf32>
    %c0_16 = arith.constant 0 : index
    %c0_17 = arith.constant 0 : index
    %28 = vector.load %arg11[%c0_16, %c0_17] : memref<8x192xf32, #tpu.memory_space<vmem>>, vector<8x192xf32>
    %29 = arith.mulf %25, %28 : vector<8x192xf32>
    %30 = arith.addf %27, %29 : vector<8x192xf32>
    %31 = vector.extract_strided_slice %30 {offsets = [0, 0], sizes = [8, 128], strides = [1, 1]} : vector<8x192xf32> to vector<8x128xf32>
    %32 = vector.extract_strided_slice %30 {offsets = [0, 128], sizes = [8, 64], strides = [1, 1]} : vector<8x192xf32> to vector<8x64xf32>
    %33 = tpu.iota {dimensions = array<i32: 0>} : vector<8x8xi32>
    %34 = tpu.iota {dimensions = array<i32: 1>} : vector<8x8xi32>
    %35 = arith.cmpi sle, %34, %33 : vector<8x8xi32>
    %c0_18 = arith.constant 0 : index
    %c0_19 = arith.constant 0 : index
    %c0_20 = arith.constant 0 : index
    %36 = vector.load %arg6[%c0_18, %c0_19, %c0_20] : memref<1x128x128xbf16, #tpu.memory_space<vmem>>, vector<1x128x128xbf16>
    %37 = vector.shape_cast %36 : vector<1x128x128xbf16> to vector<128x128xbf16>
    %38 = vector.extract_strided_slice %31 {offsets = [0, 0], sizes = [8, 32], strides = [1, 1]} : vector<8x128xf32> to vector<8x32xf32>
    %39 = arith.truncf %38 : vector<8x32xf32> to vector<8x32xbf16>
    %40 = vector.extract_strided_slice %32 {offsets = [0, 0], sizes = [8, 32], strides = [1, 1]} : vector<8x64xf32> to vector<8x32xf32>
    %41 = arith.truncf %40 : vector<8x32xf32> to vector<8x32xbf16>
    %42 = vector.extract_strided_slice %23 {offsets = [0, 0], sizes = [8, 32], strides = [1, 1]} : vector<8x64xf32> to vector<8x32xf32>
    %43 = arith.truncf %42 : vector<8x32xf32> to vector<8x32xbf16>
    %cst_21 = arith.constant dense<0.000000e+00> : vector<8x8xf32>
    %44 = tpu.matmul %39, %41, %cst_21 {dimension_numbers = #tpu.dot_dimension_numbers<[1], [1], [0], [0], [0, 0, 1, 0], [], []>} : vector<8x32xbf16>, vector<8x32xbf16>, vector<8x8xf32> -> vector<8x8xf32>
    %cst_22 = arith.constant 0.176776692 : f32
    %45 = vector.broadcast %cst_22 : f32 to vector<8x8xf32>
    %46 = arith.mulf %44, %45 : vector<8x8xf32>
    %cst_23 = arith.constant -1.000000e+30 : f32
    %47 = vector.broadcast %cst_23 : f32 to vector<8x8xf32>
    %48 = arith.select %35, %46, %47 : vector<8x8xi1>, vector<8x8xf32>
    %cst_24 = arith.constant dense<0xFF800000> : vector<8xf32>
    %49 = vector.multi_reduction <maximumf>, %48, %cst_24 [1] : vector<8x8xf32> to vector<8xf32>
    %50 = vector.shape_cast %49 : vector<8xf32> to vector<8x1xf32>
    %51 = vector.broadcast %50 : vector<8x1xf32> to vector<8x8xf32>
    %52 = arith.subf %48, %51 : vector<8x8xf32>
    %53 = math.exp %52 : vector<8x8xf32>
    %cst_25 = arith.constant dense<0.000000e+00> : vector<8xf32>
    %54 = vector.multi_reduction <add>, %53, %cst_25 [1] : vector<8x8xf32> to vector<8xf32>
    %55 = vector.shape_cast %54 : vector<8xf32> to vector<8x1xf32>
    %56 = arith.truncf %53 : vector<8x8xf32> to vector<8x8xbf16>
    %cst_26 = arith.constant dense<0.000000e+00> : vector<8x32xf32>
    %57 = tpu.matmul %56, %43, %cst_26 {dimension_numbers = #tpu.dot_dimension_numbers<[1], [0], [0], [1], [0, 0, 1, 1], [], []>} : vector<8x8xbf16>, vector<8x32xbf16>, vector<8x32xf32> -> vector<8x32xf32>
    %58 = tpu.reciprocal %55 {approx = true} : vector<8x1xf32> -> vector<8x1xf32>
    %59 = vector.broadcast %58 : vector<8x1xf32> to vector<8x32xf32>
    %60 = arith.mulf %57, %59 : vector<8x32xf32>
    %61 = arith.truncf %60 : vector<8x32xf32> to vector<8x32xbf16>
    %62 = vector.extract_strided_slice %37 {offsets = [0, 0], sizes = [32, 128], strides = [1, 1]} : vector<128x128xbf16> to vector<32x128xbf16>
    %cst_27 = arith.constant dense<0.000000e+00> : vector<8x128xf32>
    %63 = tpu.matmul %61, %62, %cst_27 {dimension_numbers = #tpu.dot_dimension_numbers<[1], [0], [0], [1], [0, 0, 1, 1], [], []>} : vector<8x32xbf16>, vector<32x128xbf16>, vector<8x128xf32> -> vector<8x128xf32>
    %64 = arith.addf %3, %63 : vector<8x128xf32>
    %65 = vector.extract_strided_slice %31 {offsets = [0, 32], sizes = [8, 32], strides = [1, 1]} : vector<8x128xf32> to vector<8x32xf32>
    %66 = arith.truncf %65 : vector<8x32xf32> to vector<8x32xbf16>
    %67 = vector.extract_strided_slice %32 {offsets = [0, 0], sizes = [8, 32], strides = [1, 1]} : vector<8x64xf32> to vector<8x32xf32>
    %68 = arith.truncf %67 : vector<8x32xf32> to vector<8x32xbf16>
    %69 = vector.extract_strided_slice %23 {offsets = [0, 0], sizes = [8, 32], strides = [1, 1]} : vector<8x64xf32> to vector<8x32xf32>
    %70 = arith.truncf %69 : vector<8x32xf32> to vector<8x32xbf16>
    %cst_28 = arith.constant dense<0.000000e+00> : vector<8x8xf32>
    %71 = tpu.matmul %66, %68, %cst_28 {dimension_numbers = #tpu.dot_dimension_numbers<[1], [1], [0], [0], [0, 0, 1, 0], [], []>} : vector<8x32xbf16>, vector<8x32xbf16>, vector<8x8xf32> -> vector<8x8xf32>
    %cst_29 = arith.constant 0.176776692 : f32
    %72 = vector.broadcast %cst_29 : f32 to vector<8x8xf32>
    %73 = arith.mulf %71, %72 : vector<8x8xf32>
    %cst_30 = arith.constant -1.000000e+30 : f32
    %74 = vector.broadcast %cst_30 : f32 to vector<8x8xf32>
    %75 = arith.select %35, %73, %74 : vector<8x8xi1>, vector<8x8xf32>
    %cst_31 = arith.constant dense<0xFF800000> : vector<8xf32>
    %76 = vector.multi_reduction <maximumf>, %75, %cst_31 [1] : vector<8x8xf32> to vector<8xf32>
    %77 = vector.shape_cast %76 : vector<8xf32> to vector<8x1xf32>
    %78 = vector.broadcast %77 : vector<8x1xf32> to vector<8x8xf32>
    %79 = arith.subf %75, %78 : vector<8x8xf32>
    %80 = math.exp %79 : vector<8x8xf32>
    %cst_32 = arith.constant dense<0.000000e+00> : vector<8xf32>
    %81 = vector.multi_reduction <add>, %80, %cst_32 [1] : vector<8x8xf32> to vector<8xf32>
    %82 = vector.shape_cast %81 : vector<8xf32> to vector<8x1xf32>
    %83 = arith.truncf %80 : vector<8x8xf32> to vector<8x8xbf16>
    %cst_33 = arith.constant dense<0.000000e+00> : vector<8x32xf32>
    %84 = tpu.matmul %83, %70, %cst_33 {dimension_numbers = #tpu.dot_dimension_numbers<[1], [0], [0], [1], [0, 0, 1, 1], [], []>} : vector<8x8xbf16>, vector<8x32xbf16>, vector<8x32xf32> -> vector<8x32xf32>
    %85 = tpu.reciprocal %82 {approx = true} : vector<8x1xf32> -> vector<8x1xf32>
    %86 = vector.broadcast %85 : vector<8x1xf32> to vector<8x32xf32>
    %87 = arith.mulf %84, %86 : vector<8x32xf32>
    %88 = arith.truncf %87 : vector<8x32xf32> to vector<8x32xbf16>
    %89 = vector.extract_strided_slice %37 {offsets = [32, 0], sizes = [32, 128], strides = [1, 1]} : vector<128x128xbf16> to vector<32x128xbf16>
    %cst_34 = arith.constant dense<0.000000e+00> : vector<8x128xf32>
    %90 = tpu.matmul %88, %89, %cst_34 {dimension_numbers = #tpu.dot_dimension_numbers<[1], [0], [0], [1], [0, 0, 1, 1], [], []>} : vector<8x32xbf16>, vector<32x128xbf16>, vector<8x128xf32> -> vector<8x128xf32>
    %91 = arith.addf %64, %90 : vector<8x128xf32>
    %92 = vector.extract_strided_slice %31 {offsets = [0, 64], sizes = [8, 32], strides = [1, 1]} : vector<8x128xf32> to vector<8x32xf32>
    %93 = arith.truncf %92 : vector<8x32xf32> to vector<8x32xbf16>
    %94 = vector.extract_strided_slice %32 {offsets = [0, 32], sizes = [8, 32], strides = [1, 1]} : vector<8x64xf32> to vector<8x32xf32>
    %95 = arith.truncf %94 : vector<8x32xf32> to vector<8x32xbf16>
    %96 = vector.extract_strided_slice %23 {offsets = [0, 32], sizes = [8, 32], strides = [1, 1]} : vector<8x64xf32> to vector<8x32xf32>
    %97 = arith.truncf %96 : vector<8x32xf32> to vector<8x32xbf16>
    %cst_35 = arith.constant dense<0.000000e+00> : vector<8x8xf32>
    %98 = tpu.matmul %93, %95, %cst_35 {dimension_numbers = #tpu.dot_dimension_numbers<[1], [1], [0], [0], [0, 0, 1, 0], [], []>} : vector<8x32xbf16>, vector<8x32xbf16>, vector<8x8xf32> -> vector<8x8xf32>
    %cst_36 = arith.constant 0.176776692 : f32
    %99 = vector.broadcast %cst_36 : f32 to vector<8x8xf32>
    %100 = arith.mulf %98, %99 : vector<8x8xf32>
    %cst_37 = arith.constant -1.000000e+30 : f32
    %101 = vector.broadcast %cst_37 : f32 to vector<8x8xf32>
    %102 = arith.select %35, %100, %101 : vector<8x8xi1>, vector<8x8xf32>
    %cst_38 = arith.constant dense<0xFF800000> : vector<8xf32>
    %103 = vector.multi_reduction <maximumf>, %102, %cst_38 [1] : vector<8x8xf32> to vector<8xf32>
    %104 = vector.shape_cast %103 : vector<8xf32> to vector<8x1xf32>
    %105 = vector.broadcast %104 : vector<8x1xf32> to vector<8x8xf32>
    %106 = arith.subf %102, %105 : vector<8x8xf32>
    %107 = math.exp %106 : vector<8x8xf32>
    %cst_39 = arith.constant dense<0.000000e+00> : vector<8xf32>
    %108 = vector.multi_reduction <add>, %107, %cst_39 [1] : vector<8x8xf32> to vector<8xf32>
    %109 = vector.shape_cast %108 : vector<8xf32> to vector<8x1xf32>
    %110 = arith.truncf %107 : vector<8x8xf32> to vector<8x8xbf16>
    %cst_40 = arith.constant dense<0.000000e+00> : vector<8x32xf32>
    %111 = tpu.matmul %110, %97, %cst_40 {dimension_numbers = #tpu.dot_dimension_numbers<[1], [0], [0], [1], [0, 0, 1, 1], [], []>} : vector<8x8xbf16>, vector<8x32xbf16>, vector<8x32xf32> -> vector<8x32xf32>
    %112 = tpu.reciprocal %109 {approx = true} : vector<8x1xf32> -> vector<8x1xf32>
    %113 = vector.broadcast %112 : vector<8x1xf32> to vector<8x32xf32>
    %114 = arith.mulf %111, %113 : vector<8x32xf32>
    %115 = arith.truncf %114 : vector<8x32xf32> to vector<8x32xbf16>
    %116 = vector.extract_strided_slice %37 {offsets = [64, 0], sizes = [32, 128], strides = [1, 1]} : vector<128x128xbf16> to vector<32x128xbf16>
    %cst_41 = arith.constant dense<0.000000e+00> : vector<8x128xf32>
    %117 = tpu.matmul %115, %116, %cst_41 {dimension_numbers = #tpu.dot_dimension_numbers<[1], [0], [0], [1], [0, 0, 1, 1], [], []>} : vector<8x32xbf16>, vector<32x128xbf16>, vector<8x128xf32> -> vector<8x128xf32>
    %118 = arith.addf %91, %117 : vector<8x128xf32>
    %119 = vector.extract_strided_slice %31 {offsets = [0, 96], sizes = [8, 32], strides = [1, 1]} : vector<8x128xf32> to vector<8x32xf32>
    %120 = arith.truncf %119 : vector<8x32xf32> to vector<8x32xbf16>
    %121 = vector.extract_strided_slice %32 {offsets = [0, 32], sizes = [8, 32], strides = [1, 1]} : vector<8x64xf32> to vector<8x32xf32>
    %122 = arith.truncf %121 : vector<8x32xf32> to vector<8x32xbf16>
    %123 = vector.extract_strided_slice %23 {offsets = [0, 32], sizes = [8, 32], strides = [1, 1]} : vector<8x64xf32> to vector<8x32xf32>
    %124 = arith.truncf %123 : vector<8x32xf32> to vector<8x32xbf16>
    %cst_42 = arith.constant dense<0.000000e+00> : vector<8x8xf32>
    %125 = tpu.matmul %120, %122, %cst_42 {dimension_numbers = #tpu.dot_dimension_numbers<[1], [1], [0], [0], [0, 0, 1, 0], [], []>} : vector<8x32xbf16>, vector<8x32xbf16>, vector<8x8xf32> -> vector<8x8xf32>
    %cst_43 = arith.constant 0.176776692 : f32
    %126 = vector.broadcast %cst_43 : f32 to vector<8x8xf32>
    %127 = arith.mulf %125, %126 : vector<8x8xf32>
    %cst_44 = arith.constant -1.000000e+30 : f32
    %128 = vector.broadcast %cst_44 : f32 to vector<8x8xf32>
    %129 = arith.select %35, %127, %128 : vector<8x8xi1>, vector<8x8xf32>
    %cst_45 = arith.constant dense<0xFF800000> : vector<8xf32>
    %130 = vector.multi_reduction <maximumf>, %129, %cst_45 [1] : vector<8x8xf32> to vector<8xf32>
    %131 = vector.shape_cast %130 : vector<8xf32> to vector<8x1xf32>
    %132 = vector.broadcast %131 : vector<8x1xf32> to vector<8x8xf32>
    %133 = arith.subf %129, %132 : vector<8x8xf32>
    %134 = math.exp %133 : vector<8x8xf32>
    %cst_46 = arith.constant dense<0.000000e+00> : vector<8xf32>
    %135 = vector.multi_reduction <add>, %134, %cst_46 [1] : vector<8x8xf32> to vector<8xf32>
    %136 = vector.shape_cast %135 : vector<8xf32> to vector<8x1xf32>
    %137 = arith.truncf %134 : vector<8x8xf32> to vector<8x8xbf16>
    %cst_47 = arith.constant dense<0.000000e+00> : vector<8x32xf32>
    %138 = tpu.matmul %137, %124, %cst_47 {dimension_numbers = #tpu.dot_dimension_numbers<[1], [0], [0], [1], [0, 0, 1, 1], [], []>} : vector<8x8xbf16>, vector<8x32xbf16>, vector<8x32xf32> -> vector<8x32xf32>
    %139 = tpu.reciprocal %136 {approx = true} : vector<8x1xf32> -> vector<8x1xf32>
    %140 = vector.broadcast %139 : vector<8x1xf32> to vector<8x32xf32>
    %141 = arith.mulf %138, %140 : vector<8x32xf32>
    %142 = arith.truncf %141 : vector<8x32xf32> to vector<8x32xbf16>
    %143 = vector.extract_strided_slice %37 {offsets = [96, 0], sizes = [32, 128], strides = [1, 1]} : vector<128x128xbf16> to vector<32x128xbf16>
    %cst_48 = arith.constant dense<0.000000e+00> : vector<8x128xf32>
    %144 = tpu.matmul %142, %143, %cst_48 {dimension_numbers = #tpu.dot_dimension_numbers<[1], [0], [0], [1], [0, 0, 1, 1], [], []>} : vector<8x32xbf16>, vector<32x128xbf16>, vector<8x128xf32> -> vector<8x128xf32>
    %145 = arith.addf %118, %144 : vector<8x128xf32>
    %146 = arith.mulf %145, %145 : vector<8x128xf32>
    %cst_49 = arith.constant dense<0.000000e+00> : vector<8xf32>
    %147 = vector.multi_reduction <add>, %146, %cst_49 [1] : vector<8x128xf32> to vector<8xf32>
    %148 = vector.shape_cast %147 : vector<8xf32> to vector<8x1xf32>
    %cst_50 = arith.constant 1.280000e+02 : f32
    %149 = vector.broadcast %cst_50 : f32 to vector<8x1xf32>
    %150 = arith.divf %148, %149 : vector<8x1xf32>
    %cst_51 = arith.constant 9.99999974E-6 : f32
    %151 = vector.broadcast %cst_51 : f32 to vector<8x1xf32>
    %152 = arith.addf %150, %151 : vector<8x1xf32>
    %153 = math.rsqrt %152 : vector<8x1xf32>
    %154 = vector.broadcast %153 : vector<8x1xf32> to vector<8x128xf32>
    %155 = arith.mulf %145, %154 : vector<8x128xf32>
    %c0_52 = arith.constant 0 : index
    %c0_53 = arith.constant 0 : index
    %c0_54 = arith.constant 0 : index
    %156 = vector.load %arg4[%c0_52, %c0_53, %c0_54] : memref<1x1x128xf32, #tpu.memory_space<vmem>>, vector<1x1x128xf32>
    %157 = vector.shape_cast %156 : vector<1x1x128xf32> to vector<1x128xf32>
    %158 = vector.broadcast %157 : vector<1x128xf32> to vector<8x128xf32>
    %159 = arith.mulf %155, %158 : vector<8x128xf32>
    %160 = arith.truncf %159 : vector<8x128xf32> to vector<8x128xbf16>
    %c0_55 = arith.constant 0 : index
    %c0_56 = arith.constant 0 : index
    %c0_57 = arith.constant 0 : index
    %161 = vector.load %arg7[%c0_55, %c0_56, %c0_57] : memref<1x128x512xbf16, #tpu.memory_space<vmem>>, vector<1x128x512xbf16>
    %162 = vector.shape_cast %161 : vector<1x128x512xbf16> to vector<128x512xbf16>
    %cst_58 = arith.constant dense<0.000000e+00> : vector<8x512xf32>
    %163 = tpu.matmul %160, %162, %cst_58 {dimension_numbers = #tpu.dot_dimension_numbers<[1], [0], [0], [1], [0, 0, 1, 1], [], []>} : vector<8x128xbf16>, vector<128x512xbf16>, vector<8x512xf32> -> vector<8x512xf32>
    %164 = vector.extract_strided_slice %163 {offsets = [0, 0], sizes = [8, 256], strides = [1, 1]} : vector<8x512xf32> to vector<8x256xf32>
    %165 = vector.extract_strided_slice %163 {offsets = [0, 256], sizes = [8, 256], strides = [1, 1]} : vector<8x512xf32> to vector<8x256xf32>
    %166 = arith.negf %164 : vector<8x256xf32>
    %167 = math.exp %166 : vector<8x256xf32>
    %cst_59 = arith.constant 1.000000e+00 : f32
    %168 = vector.broadcast %cst_59 : f32 to vector<8x256xf32>
    %169 = arith.addf %168, %167 : vector<8x256xf32>
    %170 = arith.divf %168, %169 : vector<8x256xf32>
    %171 = arith.mulf %164, %170 : vector<8x256xf32>
    %172 = arith.mulf %171, %165 : vector<8x256xf32>
    %173 = arith.truncf %172 : vector<8x256xf32> to vector<8x256xbf16>
    %c0_60 = arith.constant 0 : index
    %c0_61 = arith.constant 0 : index
    %c0_62 = arith.constant 0 : index
    %174 = vector.load %arg8[%c0_60, %c0_61, %c0_62] : memref<1x256x128xbf16, #tpu.memory_space<vmem>>, vector<1x256x128xbf16>
    %175 = vector.shape_cast %174 : vector<1x256x128xbf16> to vector<256x128xbf16>
    %cst_63 = arith.constant dense<0.000000e+00> : vector<8x128xf32>
    %176 = tpu.matmul %173, %175, %cst_63 {dimension_numbers = #tpu.dot_dimension_numbers<[1], [0], [0], [1], [0, 0, 1, 1], [], []>} : vector<8x256xbf16>, vector<256x128xbf16>, vector<8x128xf32> -> vector<8x128xf32>
    %177 = arith.addf %145, %176 : vector<8x128xf32>
    %c0_64 = arith.constant 0 : index
    %c0_65 = arith.constant 0 : index
    %178 = vector.load %arg15[%c0_64, %c0_65] : memref<8x128xf32, #tpu.memory_space<vmem>>, vector<8x128xf32>
    tpu.vector_store %arg15[%c0_64, %c0_65], %177 {strides = array<i32>} : memref<8x128xf32, #tpu.memory_space<vmem>>, vector<8x128xf32>,
    %c1_i32 = arith.constant 1 : i32
    %179 = arith.cmpi eq, %arg1, %c1_i32 : i32
    %180 = arith.extui %179 : i1 to i32
    %c0_i32_66 = arith.constant 0 : i32
    %181 = arith.cmpi ne, %180, %c0_i32_66 : i32
    scf.if %181 {
      %182 = arith.mulf %177, %177 : vector<8x128xf32>
      %cst_67 = arith.constant dense<0.000000e+00> : vector<8xf32>
      %183 = vector.multi_reduction <add>, %182, %cst_67 [1] : vector<8x128xf32> to vector<8xf32>
      %184 = vector.shape_cast %183 : vector<8xf32> to vector<8x1xf32>
      %cst_68 = arith.constant 1.280000e+02 : f32
      %185 = vector.broadcast %cst_68 : f32 to vector<8x1xf32>
      %186 = arith.divf %184, %185 : vector<8x1xf32>
      %cst_69 = arith.constant 9.99999974E-6 : f32
      %187 = vector.broadcast %cst_69 : f32 to vector<8x1xf32>
      %188 = arith.addf %186, %187 : vector<8x1xf32>
      %189 = math.rsqrt %188 : vector<8x1xf32>
      %190 = vector.broadcast %189 : vector<8x1xf32> to vector<8x128xf32>
      %191 = arith.mulf %177, %190 : vector<8x128xf32>
      %c0_70 = arith.constant 0 : index
      %c0_71 = arith.constant 0 : index
      %192 = vector.load %arg12[%c0_70, %c0_71] : memref<1x128xf32, #tpu.memory_space<vmem>>, vector<1x128xf32>
      %193 = vector.broadcast %192 : vector<1x128xf32> to vector<8x128xf32>
      %194 = arith.mulf %191, %193 : vector<8x128xf32>
      %195 = arith.truncf %194 : vector<8x128xf32> to vector<8x128xbf16>
      %c0_72 = arith.constant 0 : index
      %c0_73 = arith.constant 0 : index
      %196 = vector.load %arg13[%c0_72, %c0_73] : memref<128x256xbf16, #tpu.memory_space<vmem>>, vector<128x256xbf16>
      %cst_74 = arith.constant dense<0.000000e+00> : vector<8x256xf32>
      %197 = tpu.matmul %195, %196, %cst_74 {dimension_numbers = #tpu.dot_dimension_numbers<[1], [0], [0], [1], [0, 0, 1, 1], [], []>} : vector<8x128xbf16>, vector<128x256xbf16>, vector<8x256xf32> -> vector<8x256xf32>
      %c0_75 = arith.constant 0 : index
      %c0_76 = arith.constant 0 : index
      %198 = vector.load %arg14[%c0_75, %c0_76] : memref<8x256xf32, #tpu.memory_space<vmem>>, vector<8x256xf32>
      tpu.vector_store %arg14[%c0_75, %c0_76], %197 {strides = array<i32>} : memref<8x256xf32, #tpu.memory_space<vmem>>, vector<8x256xf32>,
    } else {
    }
    return
  }
  func.func @transform_0(%arg0: i32, %arg1: i32) -> (i32, i32) {
    %c0_i32 = arith.constant 0 : i32
    %c0_i32_0 = arith.constant 0 : i32
    return %arg0, %c0_i32 : i32, i32
  }
  func.func @transform_1(%arg0: i32, %arg1: i32) -> (i32, i32, i32) {
    %c0_i32 = arith.constant 0 : i32
    %c0_i32_0 = arith.constant 0 : i32
    %c0_i32_1 = arith.constant 0 : i32
    return %arg1, %c0_i32, %c0_i32_0 : i32, i32, i32
  }
  func.func @transform_2(%arg0: i32, %arg1: i32) -> (i32, i32, i32) {
    %c0_i32 = arith.constant 0 : i32
    %c0_i32_0 = arith.constant 0 : i32
    %c0_i32_1 = arith.constant 0 : i32
    return %arg1, %c0_i32, %c0_i32_0 : i32, i32, i32
  }
  func.func @transform_3(%arg0: i32, %arg1: i32) -> (i32, i32, i32) {
    %c0_i32 = arith.constant 0 : i32
    %c0_i32_0 = arith.constant 0 : i32
    %c0_i32_1 = arith.constant 0 : i32
    return %arg1, %c0_i32, %c0_i32_0 : i32, i32, i32
  }
  func.func @transform_4(%arg0: i32, %arg1: i32) -> (i32, i32, i32) {
    %c0_i32 = arith.constant 0 : i32
    %c0_i32_0 = arith.constant 0 : i32
    %c0_i32_1 = arith.constant 0 : i32
    return %arg1, %c0_i32, %c0_i32_0 : i32, i32, i32
  }
  func.func @transform_5(%arg0: i32, %arg1: i32) -> (i32, i32, i32) {
    %c0_i32 = arith.constant 0 : i32
    %c0_i32_0 = arith.constant 0 : i32
    %c0_i32_1 = arith.constant 0 : i32
    return %arg1, %c0_i32, %c0_i32_0 : i32, i32, i32
  }
  func.func @transform_6(%arg0: i32, %arg1: i32) -> (i32, i32, i32) {
    %c0_i32 = arith.constant 0 : i32
    %c0_i32_0 = arith.constant 0 : i32
    %c0_i32_1 = arith.constant 0 : i32
    return %arg1, %c0_i32, %c0_i32_0 : i32, i32, i32
  }
  func.func @transform_7(%arg0: i32, %arg1: i32) -> (i32, i32) {
    %c0_i32 = arith.constant 0 : i32
    %c0_i32_0 = arith.constant 0 : i32
    %c0_i32_1 = arith.constant 0 : i32
    return %c0_i32, %c0_i32_0 : i32, i32
  }
  func.func @transform_8(%arg0: i32, %arg1: i32) -> (i32, i32) {
    %c0_i32 = arith.constant 0 : i32
    %c0_i32_0 = arith.constant 0 : i32
    %c0_i32_1 = arith.constant 0 : i32
    return %c0_i32, %c0_i32_0 : i32, i32
  }
  func.func @transform_9(%arg0: i32, %arg1: i32) -> (i32, i32) {
    %c0_i32 = arith.constant 0 : i32
    %c0_i32_0 = arith.constant 0 : i32
    %c0_i32_1 = arith.constant 0 : i32
    return %c0_i32, %c0_i32_0 : i32, i32
  }
  func.func @transform_10(%arg0: i32, %arg1: i32) -> (i32, i32) {
    %c0_i32 = arith.constant 0 : i32
    %c0_i32_0 = arith.constant 0 : i32
    %c0_i32_1 = arith.constant 0 : i32
    return %c0_i32, %c0_i32_0 : i32, i32
  }
  func.func @transform_11(%arg0: i32, %arg1: i32) -> (i32, i32) {
    %c0_i32 = arith.constant 0 : i32
    %c0_i32_0 = arith.constant 0 : i32
    %c0_i32_1 = arith.constant 0 : i32
    return %c0_i32, %c0_i32_0 : i32, i32
  }
  func.func @transform_12(%arg0: i32, %arg1: i32) -> (i32, i32) {
    %c0_i32 = arith.constant 0 : i32
    %c0_i32_0 = arith.constant 0 : i32
    return %arg0, %c0_i32 : i32, i32
  }
}

</mosaic_0001>

<llo_original>
// kernel: tile.14
$region0: #{tile.14}
  %s0 = inlined_call_operand.vmem [shape: f32[8,6,32], index: 0, kind: input, shape index: {}]
  %s1 = inlined_call_operand.vmem [shape: f32[8,192], index: 1, kind: output, shape index: {}]
  %v2 = vld [vmem:[%s0] ss:$4 sm:$0xff]
  %vm3 = vcmask 261120
  %4 = vst.msk [vmem:[%s1] ss:$8 sm:$0x3] %vm3, %v2
  %s5 = scalar_lea.vmem %s1, 4294967281
  %6 = vst.msk [vmem:[%s5] ss:$8 sm:$0xc] %vm3, %v2
  %s7 = scalar_lea.vmem %s1, 4294967266
  %8 = vst.msk [vmem:[%s7] ss:$8 sm:$0x30] %vm3, %v2
  %s9 = scalar_lea.vmem %s1, 4294967251
  %10 = vst.msk [vmem:[%s9] ss:$8 sm:$0xc0] %vm3, %v2
  %s11 = scalar_lea.vmem %s0, 32
  %v12 = vld [vmem:[%s11] ss:$4 sm:$0xff]
  %vm13 = vcmask 261120
  %s14 = scalar_lea.vmem %s1, 4
  %15 = vst.msk [vmem:[%s14] ss:$8 sm:$0x3] %vm13, %v12
  %s16 = scalar_lea.vmem %s1, 4294967285
  %17 = vst.msk [vmem:[%s16] ss:$8 sm:$0xc] %vm13, %v12
  %s18 = scalar_lea.vmem %s1, 4294967270
  %19 = vst.msk [vmem:[%s18] ss:$8 sm:$0x30] %vm13, %v12
  %s20 = scalar_lea.vmem %s1, 4294967255
  %21 = vst.msk [vmem:[%s20] ss:$8 sm:$0xc0] %vm13, %v12
  %s22 = scalar_lea.vmem %s0, 3
  %v23 = vld [vmem:[%s22] ss:$8 sm:$0xf]
  %s24 = scalar_lea.vmem %s0, 3
  %v25 = vld [vmem:[%s24] ss:$8 sm:$0xf0]
  %vm26 = vcmask 1047556
  %v27 = vsel %vm26, %v25, %v23
  %28 = vrot.lane.b32.xlu0 %v27, 96
  %v29 = vpop.permute.xlu0 %28
  %vm30 = vcmask 1048320
  %31 = vst.msk [vmem:[%s1] sm:$0xff] %vm30, %v29
  %s32 = scalar_lea.vmem %s0, 2
  %v33 = vld [vmem:[%s32] ss:$8 sm:$0xf]
  %s34 = scalar_lea.vmem %s0, 2
  %v35 = vld [vmem:[%s34] ss:$8 sm:$0xf0]
  %vm36 = vcmask 1047556
  %v37 = vsel %vm36, %v35, %v33
  %38 = vrot.lane.b32.xlu0 %v37, 64
  %v39 = vpop.permute.xlu0 %38
  %vm40 = vcmask 785920
  %41 = vst.msk [vmem:[%s1] sm:$0xff] %vm40, %v39
  %s42 = scalar_lea.vmem %s0, 1
  %v43 = vld [vmem:[%s42] ss:$8 sm:$0xf]
  %s44 = scalar_lea.vmem %s0, 1
  %v45 = vld [vmem:[%s44] ss:$8 sm:$0xf0]
  %vm46 = vcmask 1047556
  %v47 = vsel %vm46, %v45, %v43
  %48 = vrot.lane.b32.xlu0 %v47, 32
  %v49 = vpop.permute.xlu0 %48
  %vm50 = vcmask 523520
  %51 = vst.msk [vmem:[%s1] sm:$0xff] %vm50, %v49
  %s52 = scalar_lea.vmem %s0, 5
  %v53 = vld [vmem:[%s52] ss:$8 sm:$0xf]
  %s54 = scalar_lea.vmem %s0, 5
  %v55 = vld [vmem:[%s54] ss:$8 sm:$0xf0]
  %vm56 = vcmask 1047556
  %v57 = vsel %vm56, %v55, %v53
  %58 = vrot.lane.b32.xlu0 %v57, 32
  %v59 = vpop.permute.xlu0 %58
  %vm60 = vcmask 523520
  %s61 = scalar_lea.vmem %s1, 8
  %62 = vst.msk [vmem:[%s61] sm:$0xff] %vm60, %v59

// kernel: transformer_forward.1
$region0: #{transformer_forward.1}
  #allocation0 [shape = 'u32[]', space=smem, size = 0x4, offset = 0x4, fixed_abs, tag = 'smem constant byte address 0x4 - core index']
  #allocation1 [shape = 'u32[144,128]{1,0:T(1,128)}', space=vmem, size = 0x12000, scoped, tag = 'internal scratch']
  #allocation2 [shape = 'f32[8,128]{1,0:T(8,128)}', space=vmem, size = 0x1000, scoped, tag = 'scratch operand']
  %s0 = inlined_call_operand.vmem [shape: f32[16,128], index: 0, kind: input, shape index: {}]
  %s1 = inlined_call_operand.vmem [shape: f32[2,1,128], index: 1, kind: input, shape index: {}]
  %s2 = inlined_call_operand.vmem [shape: f32[2,1,128], index: 2, kind: input, shape index: {}]
  %s3 = inlined_call_operand.vmem [shape: bf16[2,128,256], index: 3, kind: input, shape index: {}]
  %s4 = inlined_call_operand.vmem [shape: bf16[2,128,128], index: 4, kind: input, shape index: {}]
  %s5 = inlined_call_operand.vmem [shape: bf16[2,128,512], index: 5, kind: input, shape index: {}]
  %s6 = inlined_call_operand.vmem [shape: bf16[2,256,128], index: 6, kind: input, shape index: {}]
  %s7 = inlined_call_operand.vmem [shape: f32[192,192], index: 7, kind: input, shape index: {}]
  %s8 = inlined_call_operand.vmem [shape: f32[8,192], index: 8, kind: input, shape index: {}]
  %s9 = inlined_call_operand.vmem [shape: f32[8,192], index: 9, kind: input, shape index: {}]
  %s10 = inlined_call_operand.vmem [shape: f32[1,128], index: 10, kind: input, shape index: {}]
  %s11 = inlined_call_operand.vmem [shape: bf16[128,256], index: 11, kind: input, shape index: {}]
  %s12 = inlined_call_operand.hbm [shape: f32[16,256], index: 12, kind: output, shape index: {}]
  %s13 = sld [smem:[#allocation0]]
  $region89: #{transformer_forward.1} parent=0
    _
  %s15 = ssub.s32 1, %s13
  %s16 = scalar_select 0, %s15, %s13
  $region1: #{transformer_forward.1} parent=0
    #allocation3 [shape = 'u8[16384]{0}', space=vmem, size = 0x4000, scoped, tag = 'output window, operand 0']
    #allocation4 [shape = 's32[2]{0}', space=sflag, size = 0x8, scoped, tag = 'scoped memory for transformer_forward.1']
    %17 = vsyncpa [#allocation4], 0
    %s18 = scalar_lea.sflag [#allocation4], 1
    %19 = vsyncpa %s18, 0
    loop: start=0, step=1, limit=6
    $region2: #{transformer_forward.1} parent=1 // loop_pre_header
      _
    $region3: #{transformer_forward.1} parent=1 // loop_header
      %s21 = sphi 0, %s25
      %p22 = scmp.ge.s32.totalorder %s21, 6
      %s28 = sphi 0, %s40
      %s29 = sphi 0, %s36
      %s30 = sphi 0, %s28
      %s31 = sphi 0, %s29
      %s32 = sphi 0, %s30
      %s33 = sphi 0, %s31
      %s43 = sphi 0, %s45
      %s46 = sphi 0, %s43
      %s47 = sphi 0, %s46
      %s63 = sphi 0, %s47
      %s69 = sphi 0, %s71
      %s72 = sphi 0, %s69
      %s73 = sphi 0, %s72
      %s89 = sphi 0, %s73
      %s95 = sphi 0, %s97
      %s98 = sphi 0, %s95
      %s99 = sphi 0, %s98
      %s115 = sphi 0, %s99
      %s121 = sphi 0, %s123
      %s124 = sphi 0, %s121
      %s125 = sphi 0, %s124
      %s141 = sphi 0, %s125
      %s147 = sphi 0, %s149
      %s150 = sphi 0, %s147
      %s151 = sphi 0, %s150
      %s167 = sphi 0, %s151
      %s173 = sphi 0, %s175
      %s176 = sphi 0, %s173
      %s177 = sphi 0, %s176
      %s193 = sphi 0, %s177
      %s199 = sphi 0, %s201
      %s202 = sphi 0, %s199
      %s203 = sphi 0, %s202
      %s219 = sphi 0, %s203
      %s223 = sphi 0, %s223
      %s225 = sphi 0, %s223
      %s226 = sphi 0, %s225
      %s240 = sphi 0, %s226
      %s244 = sphi 0, %s244
      %s246 = sphi 0, %s244
      %s247 = sphi 0, %s246
      %s261 = sphi 0, %s247
      %s265 = sphi 0, %s265
      %s267 = sphi 0, %s265
      %s268 = sphi 0, %s267
      %s282 = sphi 0, %s268
      %s286 = sphi 0, %s286
      %s288 = sphi 0, %s286
      %s289 = sphi 0, %s288
      %s303 = sphi 0, %s289
      %s307 = sphi 0, %s307
      %s309 = sphi 0, %s307
      %s310 = sphi 0, %s309
      %s324 = sphi 0, %s310
      %s330 = sphi 0, %s332
      %s333 = sphi 0, %s330
      %s334 = sphi 0, %s333
      %s350 = sphi 0, %s334
    $region4: #{transformer_forward.1} parent=1 // loop_header_branch
      %24 = sbr.rel (%p22) target = $region8
    $region5: #{transformer_forward.1} parent=1 // loop_body
      %s26 = ssub.s32 %s21, 1
      %s27 = ssub.s32 %s21, 2
      %s34 = sadd.s32 1, %s29
      %p35 = scmp.ge.s32.totalorder %s34, 2
      %s36 = scalar_select %p35, 0, %s34
      %s37 = sadd.s32 1, %s28
      %s38 = scalar_select %p35, %s37, %s28
      %p39 = scmp.ge.s32.totalorder %s38, 2
      %s40 = scalar_select %p39, 0, %s38
      %s41 = ssub.s32 %s28, %s40
      %p42 = scmp.eq.s32.totalorder %s41, 0
      %s44 = sadd.s32 %s43, 1
      %s45 = scalar_select %p42, %s43, %s44
      %p48 = pneg %p42
      %p49 = scmp.eq.s32.totalorder %s21, 3
      %p50 = por %p48, %p49
      %p51 = scmp.ne.s32.totalorder %s43, %s46
      %p52 = scmp.eq.s32.totalorder %s21, 0
      %p53 = por %p51, %p52
      %p54 = scmp.ne.s32.totalorder %s43, %s46
      %p55 = scmp.eq.s32.totalorder %s26, 3
      %p56 = por %p54, %p55
      %p57 = scmp.ne.s32.totalorder %s46, %s47
      %p58 = scmp.eq.s32.totalorder %s26, 0
      %p59 = por %p57, %p58
      %p60 = scmp.ne.s32.totalorder %s46, %s47
      %p61 = scmp.eq.s32.totalorder %s27, 3
      %p62 = por %p60, %p61
      %p64 = scmp.ne.s32.totalorder %s47, %s63
      %p65 = scmp.eq.s32.totalorder %s27, 0
      %p66 = por %p64, %p65
      %s67 = ssub.s32 %s29, %s36
      %p68 = scmp.eq.s32.totalorder %s67, 0
      %s70 = sadd.s32 %s69, 1
      %s71 = scalar_select %p68, %s69, %s70
      %p74 = pneg %p68
      %p75 = scmp.eq.s32.totalorder %s21, 3
      %p76 = por %p74, %p75
      %p77 = scmp.ne.s32.totalorder %s69, %s72
      %p78 = scmp.eq.s32.totalorder %s21, 0
      %p79 = por %p77, %p78
      %p80 = scmp.ne.s32.totalorder %s69, %s72
      %p81 = scmp.eq.s32.totalorder %s26, 3
      %p82 = por %p80, %p81
      %p83 = scmp.ne.s32.totalorder %s72, %s73
      %p84 = scmp.eq.s32.totalorder %s26, 0
      %p85 = por %p83, %p84
      %p86 = scmp.ne.s32.totalorder %s72, %s73
      %p87 = scmp.eq.s32.totalorder %s27, 3
      %p88 = por %p86, %p87
      %p90 = scmp.ne.s32.totalorder %s73, %s89
      %p91 = scmp.eq.s32.totalorder %s27, 0
      %p92 = por %p90, %p91
      %s93 = ssub.s32 %s29, %s36
      %p94 = scmp.eq.s32.totalorder %s93, 0
      %s96 = sadd.s32 %s95, 1
      %s97 = scalar_select %p94, %s95, %s96
      %p100 = pneg %p94
      %p101 = scmp.eq.s32.totalorder %s21, 3
      %p102 = por %p100, %p101
      %p103 = scmp.ne.s32.totalorder %s95, %s98
      %p104 = scmp.eq.s32.totalorder %s21, 0
      %p105 = por %p103, %p104
      %p106 = scmp.ne.s32.totalorder %s95, %s98
      %p107 = scmp.eq.s32.totalorder %s26, 3
      %p108 = por %p106, %p107
      %p109 = scmp.ne.s32.totalorder %s98, %s99
      %p110 = scmp.eq.s32.totalorder %s26, 0
      %p111 = por %p109, %p110
      %p112 = scmp.ne.s32.totalorder %s98, %s99
      %p113 = scmp.eq.s32.totalorder %s27, 3
      %p114 = por %p112, %p113
      %p116 = scmp.ne.s32.totalorder %s99, %s115
      %p117 = scmp.eq.s32.totalorder %s27, 0
      %p118 = por %p116, %p117
      %s119 = ssub.s32 %s29, %s36
      %p120 = scmp.eq.s32.totalorder %s119, 0
      %s122 = sadd.s32 %s121, 1
      %s123 = scalar_select %p120, %s121, %s122
      %p126 = pneg %p120
      %p127 = scmp.eq.s32.totalorder %s21, 3
      %p128 = por %p126, %p127
      %p129 = scmp.ne.s32.totalorder %s121, %s124
      %p130 = scmp.eq.s32.totalorder %s21, 0
      %p131 = por %p129, %p130
      %p132 = scmp.ne.s32.totalorder %s121, %s124
      %p133 = scmp.eq.s32.totalorder %s26, 3
      %p134 = por %p132, %p133
      %p135 = scmp.ne.s32.totalorder %s124, %s125
      %p136 = scmp.eq.s32.totalorder %s26, 0
      %p137 = por %p135, %p136
      %p138 = scmp.ne.s32.totalorder %s124, %s125
      %p139 = scmp.eq.s32.totalorder %s27, 3
      %p140 = por %p138, %p139
      %p142 = scmp.ne.s32.totalorder %s125, %s141
      %p143 = scmp.eq.s32.totalorder %s27, 0
      %p144 = por %p142, %p143
      %s145 = ssub.s32 %s29, %s36
      %p146 = scmp.eq.s32.totalorder %s145, 0
      %s148 = sadd.s32 %s147, 1
      %s149 = scalar_select %p146, %s147, %s148
      %p152 = pneg %p146
      %p153 = scmp.eq.s32.totalorder %s21, 3
      %p154 = por %p152, %p153
      %p155 = scmp.ne.s32.totalorder %s147, %s150
      %p156 = scmp.eq.s32.totalorder %s21, 0
      %p157 = por %p155, %p156
      %p158 = scmp.ne.s32.totalorder %s147, %s150
      %p159 = scmp.eq.s32.totalorder %s26, 3
      %p160 = por %p158, %p159
      %p161 = scmp.ne.s32.totalorder %s150, %s151
      %p162 = scmp.eq.s32.totalorder %s26, 0
      %p163 = por %p161, %p162
      %p164 = scmp.ne.s32.totalorder %s150, %s151
      %p165 = scmp.eq.s32.totalorder %s27, 3
      %p166 = por %p164, %p165
      %p168 = scmp.ne.s32.totalorder %s151, %s167
      %p169 = scmp.eq.s32.totalorder %s27, 0
      %p170 = por %p168, %p169
      %s171 = ssub.s32 %s29, %s36
      %p172 = scmp.eq.s32.totalorder %s171, 0
      %s174 = sadd.s32 %s173, 1
      %s175 = scalar_select %p172, %s173, %s174
      %p178 = pneg %p172
      %p179 = scmp.eq.s32.totalorder %s21, 3
      %p180 = por %p178, %p179
      %p181 = scmp.ne.s32.totalorder %s173, %s176
      %p182 = scmp.eq.s32.totalorder %s21, 0
      %p183 = por %p181, %p182
      %p184 = scmp.ne.s32.totalorder %s173, %s176
      %p185 = scmp.eq.s32.totalorder %s26, 3
      %p186 = por %p184, %p185
      %p187 = scmp.ne.s32.totalorder %s176, %s177
      %p188 = scmp.eq.s32.totalorder %s26, 0
      %p189 = por %p187, %p188
      %p190 = scmp.ne.s32.totalorder %s176, %s177
      %p191 = scmp.eq.s32.totalorder %s27, 3
      %p192 = por %p190, %p191
      %p194 = scmp.ne.s32.totalorder %s177, %s193
      %p195 = scmp.eq.s32.totalorder %s27, 0
      %p196 = por %p194, %p195
      %s197 = ssub.s32 %s29, %s36
      %p198 = scmp.eq.s32.totalorder %s197, 0
      %s200 = sadd.s32 %s199, 1
      %s201 = scalar_select %p198, %s199, %s200
      %p204 = pneg %p198
      %p205 = scmp.eq.s32.totalorder %s21, 3
      %p206 = por %p204, %p205
      %p207 = scmp.ne.s32.totalorder %s199, %s202
      %p208 = scmp.eq.s32.totalorder %s21, 0
      %p209 = por %p207, %p208
      %p210 = scmp.ne.s32.totalorder %s199, %s202
      %p211 = scmp.eq.s32.totalorder %s26, 3
      %p212 = por %p210, %p211
      %p213 = scmp.ne.s32.totalorder %s202, %s203
      %p214 = scmp.eq.s32.totalorder %s26, 0
      %p215 = por %p213, %p214
      %p216 = scmp.ne.s32.totalorder %s202, %s203
      %p217 = scmp.eq.s32.totalorder %s27, 3
      %p218 = por %p216, %p217
      %p220 = scmp.ne.s32.totalorder %s203, %s219
      %p221 = scmp.eq.s32.totalorder %s27, 0
      %p222 = por %p220, %p221
      %s224 = sadd.s32 %s223, 1
      %p227 = scmp.eq.s32.totalorder %s21, 3
      %p228 = scmp.ne.s32.totalorder %s223, %s225
      %p229 = scmp.eq.s32.totalorder %s21, 0
      %p230 = por %p228, %p229
      %p231 = scmp.ne.s32.totalorder %s223, %s225
      %p232 = scmp.eq.s32.totalorder %s26, 3
      %p233 = por %p231, %p232
      %p234 = scmp.ne.s32.totalorder %s225, %s226
      %p235 = scmp.eq.s32.totalorder %s26, 0
      %p236 = por %p234, %p235
      %p237 = scmp.ne.s32.totalorder %s225, %s226
      %p238 = scmp.eq.s32.totalorder %s27, 3
      %p239 = por %p237, %p238
      %p241 = scmp.ne.s32.totalorder %s226, %s240
      %p242 = scmp.eq.s32.totalorder %s27, 0
      %p243 = por %p241, %p242
      %s245 = sadd.s32 %s244, 1
      %p248 = scmp.eq.s32.totalorder %s21, 3
      %p249 = scmp.ne.s32.totalorder %s244, %s246
      %p250 = scmp.eq.s32.totalorder %s21, 0
      %p251 = por %p249, %p250
      %p252 = scmp.ne.s32.totalorder %s244, %s246
      %p253 = scmp.eq.s32.totalorder %s26, 3
      %p254 = por %p252, %p253
      %p255 = scmp.ne.s32.totalorder %s246, %s247
      %p256 = scmp.eq.s32.totalorder %s26, 0
      %p257 = por %p255, %p256
      %p258 = scmp.ne.s32.totalorder %s246, %s247
      %p259 = scmp.eq.s32.totalorder %s27, 3
      %p260 = por %p258, %p259
      %p262 = scmp.ne.s32.totalorder %s247, %s261
      %p263 = scmp.eq.s32.totalorder %s27, 0
      %p264 = por %p262, %p263
      %s266 = sadd.s32 %s265, 1
      %p269 = scmp.eq.s32.totalorder %s21, 3
      %p270 = scmp.ne.s32.totalorder %s265, %s267
      %p271 = scmp.eq.s32.totalorder %s21, 0
      %p272 = por %p270, %p271
      %p273 = scmp.ne.s32.totalorder %s265, %s267
      %p274 = scmp.eq.s32.totalorder %s26, 3
      %p275 = por %p273, %p274
      %p276 = scmp.ne.s32.totalorder %s267, %s268
      %p277 = scmp.eq.s32.totalorder %s26, 0
      %p278 = por %p276, %p277
      %p279 = scmp.ne.s32.totalorder %s267, %s268
      %p280 = scmp.eq.s32.totalorder %s27, 3
      %p281 = por %p279, %p280
      %p283 = scmp.ne.s32.totalorder %s268, %s282
      %p284 = scmp.eq.s32.totalorder %s27, 0
      %p285 = por %p283, %p284
      %s287 = sadd.s32 %s286, 1
      %p290 = scmp.eq.s32.totalorder %s21, 3
      %p291 = scmp.ne.s32.totalorder %s286, %s288
      %p292 = scmp.eq.s32.totalorder %s21, 0
      %p293 = por %p291, %p292
      %p294 = scmp.ne.s32.totalorder %s286, %s288
      %p295 = scmp.eq.s32.totalorder %s26, 3
      %p296 = por %p294, %p295
      %p297 = scmp.ne.s32.totalorder %s288, %s289
      %p298 = scmp.eq.s32.totalorder %s26, 0
      %p299 = por %p297, %p298
      %p300 = scmp.ne.s32.totalorder %s288, %s289
      %p301 = scmp.eq.s32.totalorder %s27, 3
      %p302 = por %p300, %p301
      %p304 = scmp.ne.s32.totalorder %s289, %s303
      %p305 = scmp.eq.s32.totalorder %s27, 0
      %p306 = por %p304, %p305
      %s308 = sadd.s32 %s307, 1
      %p311 = scmp.eq.s32.totalorder %s21, 3
      %p312 = scmp.ne.s32.totalorder %s307, %s309
      %p313 = scmp.eq.s32.totalorder %s21, 0
      %p314 = por %p312, %p313
      %p315 = scmp.ne.s32.totalorder %s307, %s309
      %p316 = scmp.eq.s32.totalorder %s26, 3
      %p317 = por %p315, %p316
      %p318 = scmp.ne.s32.totalorder %s309, %s310
      %p319 = scmp.eq.s32.totalorder %s26, 0
      %p320 = por %p318, %p319
      %p321 = scmp.ne.s32.totalorder %s309, %s310
      %p322 = scmp.eq.s32.totalorder %s27, 3
      %p323 = por %p321, %p322
      %p325 = scmp.ne.s32.totalorder %s310, %s324
      %p326 = scmp.eq.s32.totalorder %s27, 0
      %p327 = por %p325, %p326
      %s328 = ssub.s32 %s28, %s40
      %p329 = scmp.eq.s32.totalorder %s328, 0
      %s331 = sadd.s32 %s330, 1
      %s332 = scalar_select %p329, %s330, %s331
      %p335 = pneg %p329
      %p336 = scmp.eq.s32.totalorder %s21, 3
      %p337 = por %p335, %p336
      %p338 = scmp.ne.s32.totalorder %s330, %s333
      %p339 = scmp.eq.s32.totalorder %s21, 0
      %p340 = por %p338, %p339
      %p341 = scmp.ne.s32.totalorder %s330, %s333
      %p342 = scmp.eq.s32.totalorder %s26, 3
      %p343 = por %p341, %p342
      %p344 = scmp.ne.s32.totalorder %s333, %s334
      %p345 = scmp.eq.s32.totalorder %s26, 0
      %p346 = por %p344, %p345
      %p347 = scmp.ne.s32.totalorder %s333, %s334
      %p348 = scmp.eq.s32.totalorder %s27, 3
      %p349 = por %p347, %p348
      %p351 = scmp.ne.s32.totalorder %s334, %s350
      %p352 = scmp.eq.s32.totalorder %s27, 0
      %p353 = por %p351, %p352
      %p354 = scmp.le.s32.totalorder 1, %s21
      %p355 = scmp.lt.s32.totalorder %s21, 5
      %p356 = pnand %p354, %p355
      %p357 = pneg %p356
      // Predicated region
      $region9: #{transformer_forward.1} parent=5 // pred_check
        _
      $region10: #{transformer_forward.1} parent=5 // pred_check_branch
        %359 = sbr.rel (%p356) target = $region12
      $region11: #{transformer_forward.1} parent=5 // pred_region
        %s360 = ssub.s32 %s21, 1
        // Predicated region
        $region13: #{transformer_forward.1} parent=11 // pred_check
          %p361 = pneg %p236
        $region14: #{transformer_forward.1} parent=11 // pred_check_branch
          %363 = sbr.rel (%p361) target = $region16
        $region15: #{transformer_forward.1} parent=11 // pred_region
          _
        $region16: #{transformer_forward.1} parent=11 // pred_fallthru
          _
        // Predicated region
        $region17: #{transformer_forward.1} parent=11 // pred_check
          %p364 = pneg %p257
        $region18: #{transformer_forward.1} parent=11 // pred_check_branch
          %366 = sbr.rel (%p364) target = $region20
        $region19: #{transformer_forward.1} parent=11 // pred_region
          _
        $region20: #{transformer_forward.1} parent=11 // pred_fallthru
          _
        // Predicated region
        $region21: #{transformer_forward.1} parent=11 // pred_check
          %p367 = pneg %p278
        $region22: #{transformer_forward.1} parent=11 // pred_check_branch
          %369 = sbr.rel (%p367) target = $region24
        $region23: #{transformer_forward.1} parent=11 // pred_region
          _
        $region24: #{transformer_forward.1} parent=11 // pred_fallthru
          _
        // Predicated region
        $region25: #{transformer_forward.1} parent=11 // pred_check
          %p370 = pneg %p299
        $region26: #{transformer_forward.1} parent=11 // pred_check_branch
          %372 = sbr.rel (%p370) target = $region28
        $region27: #{transformer_forward.1} parent=11 // pred_region
          _
        $region28: #{transformer_forward.1} parent=11 // pred_fallthru
          _
        // Predicated region
        $region29: #{transformer_forward.1} parent=11 // pred_check
          %p373 = pneg %p320
        $region30: #{transformer_forward.1} parent=11 // pred_check_branch
          %375 = sbr.rel (%p373) target = $region32
        $region31: #{transformer_forward.1} parent=11 // pred_region
          _
        $region32: #{transformer_forward.1} parent=11 // pred_fallthru
          _
      $region12: #{transformer_forward.1} parent=5 // pred_fallthru
        _
      %p376 = scmp.lt.s32.totalorder %s21, 4
      // Predicated region
      $region33: #{transformer_forward.1} parent=5 // pred_check
        %p377 = pneg %p376
      $region34: #{transformer_forward.1} parent=5 // pred_check_branch
        %379 = sbr.rel (%p377) target = $region36
      $region35: #{transformer_forward.1} parent=5 // pred_region
        // Predicated region
        $region37: #{transformer_forward.1} parent=35 // pred_check
          %p380 = pneg %p53
        $region38: #{transformer_forward.1} parent=35 // pred_check_branch
          %382 = sbr.rel (%p380) target = $region40
        $region39: #{transformer_forward.1} parent=35 // pred_region
          %p383 = scmp.lt.s32.totalorder %s28, 1
          %s384 = scalar_select %p383, %s28, 1
          %s385 = smul.addr %s384, 8
          %s386 = scalar_lea.vmem %s0, %s385
        $region40: #{transformer_forward.1} parent=35 // pred_fallthru
          _
        // Predicated region
        $region41: #{transformer_forward.1} parent=35 // pred_check
          %p387 = pneg %p79
        $region42: #{transformer_forward.1} parent=35 // pred_check_branch
          %389 = sbr.rel (%p387) target = $region44
        $region43: #{transformer_forward.1} parent=35 // pred_region
          %p390 = scmp.lt.s32.totalorder %s29, 1
          %s391 = scalar_select %p390, %s29, 1
          %s392 = scalar_lea.vmem %s1, %s391
        $region44: #{transformer_forward.1} parent=35 // pred_fallthru
          _
        // Predicated region
        $region45: #{transformer_forward.1} parent=35 // pred_check
          %p393 = pneg %p105
        $region46: #{transformer_forward.1} parent=35 // pred_check_branch
          %395 = sbr.rel (%p393) target = $region48
        $region47: #{transformer_forward.1} parent=35 // pred_region
          %p396 = scmp.lt.s32.totalorder %s29, 1
          %s397 = scalar_select %p396, %s29, 1
          %s398 = scalar_lea.vmem %s2, %s397
        $region48: #{transformer_forward.1} parent=35 // pred_fallthru
          _
        // Predicated region
        $region49: #{transformer_forward.1} parent=35 // pred_check
          %p399 = pneg %p131
        $region50: #{transformer_forward.1} parent=35 // pred_check_branch
          %401 = sbr.rel (%p399) target = $region52
        $region51: #{transformer_forward.1} parent=35 // pred_region
          %p402 = scmp.lt.s32.totalorder %s29, 1
          %s403 = scalar_select %p402, %s29, 1
          %s404 = smul.addr %s403, 32
          %s405 = smul.addr %s404, 4
          %s406 = scalar_lea.vmem %s3, %s405
        $region52: #{transformer_forward.1} parent=35 // pred_fallthru
          _
        // Predicated region
        $region53: #{transformer_forward.1} parent=35 // pred_check
          %p407 = pneg %p157
        $region54: #{transformer_forward.1} parent=35 // pred_check_branch
          %409 = sbr.rel (%p407) target = $region56
        $region55: #{transformer_forward.1} parent=35 // pred_region
          %p410 = scmp.lt.s32.totalorder %s29, 1
          %s411 = scalar_select %p410, %s29, 1
          %s412 = smul.addr %s411, 16
          %s413 = smul.addr %s412, 4
          %s414 = scalar_lea.vmem %s4, %s413
        $region56: #{transformer_forward.1} parent=35 // pred_fallthru
          _
        // Predicated region
        $region57: #{transformer_forward.1} parent=35 // pred_check
          %p415 = pneg %p183
        $region58: #{transformer_forward.1} parent=35 // pred_check_branch
          %417 = sbr.rel (%p415) target = $region60
        $region59: #{transformer_forward.1} parent=35 // pred_region
          %p418 = scmp.lt.s32.totalorder %s29, 1
          %s419 = scalar_select %p418, %s29, 1
          %s420 = smul.addr %s419, 64
          %s421 = smul.addr %s420, 4
          %s422 = scalar_lea.vmem %s5, %s421
        $region60: #{transformer_forward.1} parent=35 // pred_fallthru
          _
        // Predicated region
        $region61: #{transformer_forward.1} parent=35 // pred_check
          %p423 = pneg %p209
        $region62: #{transformer_forward.1} parent=35 // pred_check_branch
          %425 = sbr.rel (%p423) target = $region64
        $region63: #{transformer_forward.1} parent=35 // pred_region
          %p426 = scmp.lt.s32.totalorder %s29, 1
          %s427 = scalar_select %p426, %s29, 1
          %s428 = smul.addr %s427, 32
          %s429 = smul.addr %s428, 4
          %s430 = scalar_lea.vmem %s6, %s429
        $region64: #{transformer_forward.1} parent=35 // pred_fallthru
          _
      $region36: #{transformer_forward.1} parent=5 // pred_fallthru
        _
      %p431 = scmp.le.s32.totalorder 1, %s21
      %p432 = scmp.lt.s32.totalorder %s21, 5
      %p433 = pnand %p431, %p432
      %p434 = pneg %p433
      // Predicated region
      $region65: #{transformer_forward.1} parent=5 // pred_check
        _
      $region66: #{transformer_forward.1} parent=5 // pred_check_branch
        %436 = sbr.rel (%p433) target = $region68
      $region67: #{transformer_forward.1} parent=5 // pred_region
        %s437 = ssub.s32 %s21, 1
        %p438 = scmp.lt.s32.totalorder %s30, 1
        %s439 = scalar_select %p438, %s30, 1
        %s440 = smul.addr %s439, 8
        %s441 = scalar_lea.vmem %s0, %s440
        %p442 = pneg %p59
        %p443 = pneg %p56
        %p444 = scmp.lt.s32.totalorder %s31, 1
        %s445 = scalar_select %p444, %s31, 1
        %s446 = scalar_lea.vmem %s1, %s445
        %p447 = pneg %p85
        %p448 = pneg %p82
        %p449 = scmp.lt.s32.totalorder %s31, 1
        %s450 = scalar_select %p449, %s31, 1
        %s451 = scalar_lea.vmem %s2, %s450
        %p452 = pneg %p111
        %p453 = pneg %p108
        %p454 = scmp.lt.s32.totalorder %s31, 1
        %s455 = scalar_select %p454, %s31, 1
        %s456 = smul.addr %s455, 32
        %s457 = smul.addr %s456, 4
        %s458 = scalar_lea.vmem %s3, %s457
        %p459 = pneg %p137
        %p460 = pneg %p134
        %p461 = scmp.lt.s32.totalorder %s31, 1
        %s462 = scalar_select %p461, %s31, 1
        %s463 = smul.addr %s462, 16
        %s464 = smul.addr %s463, 4
        %s465 = scalar_lea.vmem %s4, %s464
        %p466 = pneg %p163
        %p467 = pneg %p160
        %p468 = scmp.lt.s32.totalorder %s31, 1
        %s469 = scalar_select %p468, %s31, 1
        %s470 = smul.addr %s469, 64
        %s471 = smul.addr %s470, 4
        %s472 = scalar_lea.vmem %s5, %s471
        %p473 = pneg %p189
        %p474 = pneg %p186
        %p475 = scmp.lt.s32.totalorder %s31, 1
        %s476 = scalar_select %p475, %s31, 1
        %s477 = smul.addr %s476, 32
        %s478 = smul.addr %s477, 4
        %s479 = scalar_lea.vmem %s6, %s478
        %p480 = pneg %p215
        %p481 = pneg %p212
        %p482 = pneg %p236
        %p483 = pneg %p233
        %p484 = pneg %p257
        %p485 = pneg %p254
        %p486 = pneg %p278
        %p487 = pneg %p275
        %p488 = pneg %p299
        %p489 = pneg %p296
        %p490 = pneg %p320
        %p491 = pneg %p317
        %p492 = pneg %p346
        %p493 = pneg %p343
        %s494 = sand.u32 %s333, 1
        %s495 = scalar_lea.sflag [#allocation4], %s494
        %s496 = sand.u32 %s333, 1
        %s497 = smul.addr %s496, 16
        %s498 = scalar_lea.vmem [#allocation3], %s497
        %p499 = scmp.lt.s32.totalorder %s30, 1
        %s500 = scalar_select %p499, %s30, 1
        %s501 = smul.addr %s500, 8
        %s502 = scalar_lea.vmem %s0, %s501
        %p503 = scmp.lt.s32.totalorder %s31, 1
        %s504 = scalar_select %p503, %s31, 1
        %s505 = scalar_lea.vmem %s1, %s504
        %p506 = scmp.lt.s32.totalorder %s31, 1
        %s507 = scalar_select %p506, %s31, 1
        %s508 = scalar_lea.vmem %s2, %s507
        %p509 = scmp.lt.s32.totalorder %s31, 1
        %s510 = scalar_select %p509, %s31, 1
        %s511 = smul.addr %s510, 32
        %s512 = smul.addr %s511, 4
        %s513 = scalar_lea.vmem %s3, %s512
        %p514 = scmp.lt.s32.totalorder %s31, 1
        %s515 = scalar_select %p514, %s31, 1
        %s516 = smul.addr %s515, 16
        %s517 = smul.addr %s516, 4
        %s518 = scalar_lea.vmem %s4, %s517
        %p519 = scmp.lt.s32.totalorder %s31, 1
        %s520 = scalar_select %p519, %s31, 1
        %s521 = smul.addr %s520, 64
        %s522 = smul.addr %s521, 4
        %s523 = scalar_lea.vmem %s5, %s522
        %p524 = scmp.lt.s32.totalorder %s31, 1
        %s525 = scalar_select %p524, %s31, 1
        %s526 = smul.addr %s525, 32
        %s527 = smul.addr %s526, 4
        %s528 = scalar_lea.vmem %s6, %s527
        %p530 = scmp.eq.s32.totalorder %s31, 0
        // Predicated region
        $region69: #{transformer_forward.1} parent=67 // pred_check
          %p531 = pneg %p530
        $region70: #{transformer_forward.1} parent=67 // pred_check_branch
          %533 = sbr.rel (%p531) target = $region72
        $region71: #{transformer_forward.1} parent=67 // pred_region
          %v534 = vld [vmem:[%s502] sm:$0xff]
          %535 = vst [vmem:[#allocation2] sm:$0xff] %v534
        $region72: #{transformer_forward.1} parent=67 // pred_fallthru
          _
        %v536 = vld [vmem:[#allocation2] sm:$0xff]
        %v537 = vmul.f32 %v536, %v536
        %538 = vadd.xlane.f32.xlu0 %v537
        %v539 = vpop.xlane.xlu0 %538
        %v540 = vrcp.pop 128.0
        %v541 = vmul.f32 %v539, %v540
        %v542 = vadd.f32 %v541, 1e-05
        %v543 = vrsqrt.pop %v542
        %v544 = vmul.f32 %v536, %v543
        %v545 = vld [vmem:[%s505] sm:$0x1]
        %v547 = vlaneseq
        %v548 = vshrl.u32 %v547, 7
        %v549 = vsub.s32 0, %v548
        %v550 = vrot.slane %v545, %v549
        %v552 = vmul.f32 %v544, %v550
        %v553 = vpack.c.bf16 %v552, %v552
        %v554 = vld [vmem:[%s513] sm:$0xff]
        %v555 = vld [vmem:[%s513 + $0x8] sm:$0xff]
        %v556 = vld [vmem:[%s513 + $0x10] sm:$0xff]
        %v557 = vld [vmem:[%s513 + $0x18] sm:$0xff]
        %v558 = vld [vmem:[%s513 + $0x20] sm:$0xff]
        %v559 = vld [vmem:[%s513 + $0x28] sm:$0xff]
        %v560 = vld [vmem:[%s513 + $0x30] sm:$0xff]
        %v561 = vld [vmem:[%s513 + $0x38] sm:$0xff]
        %v562 = vld [vmem:[%s513 + $0x40] sm:$0xff]
        %v563 = vld [vmem:[%s513 + $0x48] sm:$0xff]
        %v564 = vld [vmem:[%s513 + $0x50] sm:$0xff]
        %v565 = vld [vmem:[%s513 + $0x58] sm:$0xff]
        %v566 = vld [vmem:[%s513 + $0x60] sm:$0xff]
        %v567 = vld [vmem:[%s513 + $0x68] sm:$0xff]
        %v568 = vld [vmem:[%s513 + $0x70] sm:$0xff]
        %v569 = vld [vmem:[%s513 + $0x78] sm:$0xff]
        %v586 = vunpack.c.l.b16 %v554
        %v587 = vunpack.c.h.b16 %v554
        %v588 = vunpack.c.l.b16 %v555
        %v589 = vunpack.c.h.b16 %v555
        %v590 = vunpack.c.l.b16 %v556
        %v591 = vunpack.c.h.b16 %v556
        %v592 = vunpack.c.l.b16 %v557
        %v593 = vunpack.c.h.b16 %v557
        %v594 = vunpack.c.l.b16 %v558
        %v595 = vunpack.c.h.b16 %v558
        %v596 = vunpack.c.l.b16 %v559
        %v597 = vunpack.c.h.b16 %v559
        %v598 = vunpack.c.l.b16 %v560
        %v599 = vunpack.c.h.b16 %v560
        %v600 = vunpack.c.l.b16 %v561
        %v601 = vunpack.c.h.b16 %v561
        %v602 = vunpack.c.l.b16 %v562
        %v603 = vunpack.c.h.b16 %v562
        %v604 = vunpack.c.l.b16 %v563
        %v605 = vunpack.c.h.b16 %v563
        %v606 = vunpack.c.l.b16 %v564
        %v607 = vunpack.c.h.b16 %v564
        %v608 = vunpack.c.l.b16 %v565
        %v609 = vunpack.c.h.b16 %v565
        %v610 = vunpack.c.l.b16 %v566
        %v611 = vunpack.c.h.b16 %v566
        %v612 = vunpack.c.l.b16 %v567
        %v613 = vunpack.c.h.b16 %v567
        %v614 = vunpack.c.l.b16 %v568
        %v615 = vunpack.c.h.b16 %v568
        %v616 = vunpack.c.l.b16 %v569
        %v617 = vunpack.c.h.b16 %v569
        %v618 = vpack.c.b16 %v588, %v586
        %v619 = vpack.c.b16 %v589, %v587
        %v620 = vpack.c.b16 %v592, %v590
        %v621 = vpack.c.b16 %v593, %v591
        %v622 = vpack.c.b16 %v596, %v594
        %v623 = vpack.c.b16 %v597, %v595
        %v624 = vpack.c.b16 %v600, %v598
        %v625 = vpack.c.b16 %v601, %v599
        %v626 = vpack.c.b16 %v604, %v602
        %v627 = vpack.c.b16 %v605, %v603
        %v628 = vpack.c.b16 %v608, %v606
        %v629 = vpack.c.b16 %v609, %v607
        %v630 = vpack.c.b16 %v612, %v610
        %v631 = vpack.c.b16 %v613, %v611
        %v632 = vpack.c.b16 %v616, %v614
        %v633 = vpack.c.b16 %v617, %v615
        %650 = vmatprep.subr.bf16.mxu0 %v633
        %651 = vmatpush1.bf16.msra.mxu0 %v632
        %652 = vmatprep.subr.bf16.mxu0 %v631
        %653 = vmatpush1.bf16.msra.mxu0 %v630
        %654 = vmatprep.subr.bf16.mxu0 %v629
        %655 = vmatpush1.bf16.msra.mxu0 %v628
        %656 = vmatprep.subr.bf16.mxu0 %v627
        %657 = vmatpush1.bf16.msra.mxu0 %v626
        %658 = vmatprep.subr.bf16.mxu0 %v625
        %659 = vmatpush1.bf16.msra.mxu0 %v624
        %660 = vmatprep.subr.bf16.mxu0 %v623
        %661 = vmatpush1.bf16.msra.mxu0 %v622
        %662 = vmatprep.subr.bf16.mxu0 %v621
        %663 = vmatpush1.bf16.msra.mxu0 %v620
        %664 = vmatprep.subr.bf16.mxu0 %v619
        %665 = vmatpush1.bf16.msra.mxu0 %v618
        %666 = vmatprep.subr.bf16.mxu0 0
        %667 = vmatpush2.bf16.msra.mxu0 0
        %668 = vmatprep.subr.bf16.mxu0 0
        %669 = vmatpush2.bf16.msra.mxu0 0
        %670 = vmatprep.subr.bf16.mxu0 0
        %671 = vmatpush2.bf16.msra.mxu0 0
        %672 = vmatprep.subr.bf16.mxu0 0
        %673 = vmatpush2.bf16.msra.mxu0 0
        %674 = vmatprep.subr.bf16.mxu0 0
        %675 = vmatpush2.bf16.msra.mxu0 0
        %676 = vmatprep.subr.bf16.mxu0 0
        %677 = vmatpush2.bf16.msra.mxu0 0
        %678 = vmatprep.subr.bf16.mxu0 0
        %679 = vmatpush2.bf16.msra.mxu0 0
        %680 = vmatprep.subr.bf16.mxu0 0
        %681 = vmatpush2.bf16.msra.mxu0 0
        %682 = vmatprep.mubr.bf16.mxu0 0
        %683 = vmatmul.mubr.bf16.gmra.mxu0 %v553
        %v684 = vpop.f32.mrf.mxu0
        %v685 = vadd.f32 0.0, %v684
        %v686 = vpop.f32.mrf.mxu0
        %v687 = vadd.f32 0.0, %v686
        %v688 = vpop.f32.mrf.mxu0
        %v689 = vpop.f32.mrf.mxu0
        %690 = vdwg.mxu0
        %v691 = vld [vmem:[%s7] sm:$0xff]
        %v692 = vld [vmem:[%s7 + $0x8] sm:$0xff]
        %v693 = vld [vmem:[%s7 + $0x10] sm:$0xff]
        %v694 = vld [vmem:[%s7 + $0x18] sm:$0xff]
        %v695 = vld [vmem:[%s7 + $0x20] sm:$0xff]
        %v696 = vld [vmem:[%s7 + $0x28] sm:$0xff]
        %v697 = vld [vmem:[%s7 + $0x30] sm:$0xff]
        %v698 = vld [vmem:[%s7 + $0x38] sm:$0xff]
        %v699 = vld [vmem:[%s7 + $0x40] sm:$0xff]
        %v700 = vld [vmem:[%s7 + $0x48] sm:$0xff]
        %v701 = vld [vmem:[%s7 + $0x50] sm:$0xff]
        %v702 = vld [vmem:[%s7 + $0x58] sm:$0xff]
        %v703 = vld [vmem:[%s7 + $0x60] sm:$0xff]
        %v704 = vld [vmem:[%s7 + $0x68] sm:$0xff]
        %v705 = vld [vmem:[%s7 + $0x70] sm:$0xff]
        %v706 = vld [vmem:[%s7 + $0x78] sm:$0xff]
        %v707 = vld [vmem:[%s7 + $0x80] sm:$0xff]
        %v708 = vld [vmem:[%s7 + $0x88] sm:$0xff]
        %v709 = vld [vmem:[%s7 + $0x90] sm:$0xff]
        %v710 = vld [vmem:[%s7 + $0x98] sm:$0xff]
        %v711 = vld [vmem:[%s7 + $0xa0] sm:$0xff]
        %v712 = vld [vmem:[%s7 + $0xa8] sm:$0xff]
        %v713 = vld [vmem:[%s7 + $0xb0] sm:$0xff]
        %v714 = vld [vmem:[%s7 + $0xb8] sm:$0xff]
        %v715 = vld [vmem:[%s7 + $0xc0] sm:$0xff]
        %v716 = vld [vmem:[%s7 + $0xc8] sm:$0xff]
        %v717 = vld [vmem:[%s7 + $0xd0] sm:$0xff]
        %v718 = vld [vmem:[%s7 + $0xd8] sm:$0xff]
        %v719 = vld [vmem:[%s7 + $0xe0] sm:$0xff]
        %v720 = vld [vmem:[%s7 + $0xe8] sm:$0xff]
        %v721 = vld [vmem:[%s7 + $0xf0] sm:$0xff]
        %v722 = vld [vmem:[%s7 + $0xf8] sm:$0xff]
        %v723 = vld [vmem:[%s7 + $0x100] sm:$0xff]
        %v724 = vld [vmem:[%s7 + $0x108] sm:$0xff]
        %v725 = vld [vmem:[%s7 + $0x110] sm:$0xff]
        %v726 = vld [vmem:[%s7 + $0x118] sm:$0xff]
        %v727 = vld [vmem:[%s7 + $0x120] sm:$0xff]
        %v728 = vld [vmem:[%s7 + $0x128] sm:$0xff]
        %v729 = vld [vmem:[%s7 + $0x130] sm:$0xff]
        %v730 = vld [vmem:[%s7 + $0x138] sm:$0xff]
        %v731 = vld [vmem:[%s7 + $0x140] sm:$0xff]
        %v732 = vld [vmem:[%s7 + $0x148] sm:$0xff]
        %v733 = vld [vmem:[%s7 + $0x150] sm:$0xff]
        %v734 = vld [vmem:[%s7 + $0x158] sm:$0xff]
        %v735 = vld [vmem:[%s7 + $0x160] sm:$0xff]
        %v736 = vld [vmem:[%s7 + $0x168] sm:$0xff]
        %v737 = vld [vmem:[%s7 + $0x170] sm:$0xff]
        %v738 = vld [vmem:[%s7 + $0x178] sm:$0xff]
        %vm739 = vcmask 523264
        %v741 = vsel %vm739, %v687, 0
        %743 = vmatprep.subr.mxu0 %v722
        %744 = vmatpush1.msra.mxu0 %v721
        %745 = vmatprep.subr.mxu0 %v720
        %746 = vmatpush1.msra.mxu0 %v719
        %747 = vmatprep.subr.mxu0 %v718
        %748 = vmatpush1.msra.mxu0 %v717
        %749 = vmatprep.subr.mxu0 %v716
        %750 = vmatpush1.msra.mxu0 %v715
        %751 = vmatprep.subr.mxu0 %v714
        %752 = vmatpush1.msra.mxu0 %v713
        %753 = vmatprep.subr.mxu0 %v712
        %754 = vmatpush1.msra.mxu0 %v711
        %755 = vmatprep.subr.mxu0 %v710
        %756 = vmatpush1.msra.mxu0 %v709
        %757 = vmatprep.subr.mxu0 %v708
        %758 = vmatpush1.msra.mxu0 %v707
        %759 = vmatprep.subr.mxu0 %v706
        %760 = vmatpush1.msra.mxu0 %v705
        %761 = vmatprep.subr.mxu0 %v704
        %762 = vmatpush1.msra.mxu0 %v703
        %763 = vmatprep.subr.mxu0 %v702
        %764 = vmatpush1.msra.mxu0 %v701
        %765 = vmatprep.subr.mxu0 %v700
        %766 = vmatpush1.msra.mxu0 %v699
        %767 = vmatprep.subr.mxu0 %v698
        %768 = vmatpush1.msra.mxu0 %v697
        %769 = vmatprep.subr.mxu0 %v696
        %770 = vmatpush1.msra.mxu0 %v695
        %771 = vmatprep.subr.mxu0 %v694
        %772 = vmatpush1.msra.mxu0 %v693
        %773 = vmatprep.subr.mxu0 %v692
        %774 = vmatpush1.msra.mxu0 %v691
        %775 = vmatprep.subr.mxu0 0.0
        %776 = vmatpush2.msra.mxu0 0.0
        %777 = vmatprep.subr.mxu0 0.0
        %778 = vmatpush2.msra.mxu0 0.0
        %779 = vmatprep.subr.mxu0 0.0
        %780 = vmatpush2.msra.mxu0 0.0
        %781 = vmatprep.subr.mxu0 0.0
        %782 = vmatpush2.msra.mxu0 0.0
        %783 = vmatprep.subr.mxu0 0.0
        %784 = vmatpush2.msra.mxu0 0.0
        %785 = vmatprep.subr.mxu0 0.0
        %786 = vmatpush2.msra.mxu0 0.0
        %787 = vmatprep.subr.mxu0 0.0
        %788 = vmatpush2.msra.mxu0 0.0
        %789 = vmatprep.subr.mxu0 0.0
        %790 = vmatpush2.msra.mxu0 0.0
        %791 = vmatprep.subr.mxu0 %v738
        %792 = vmatpush2.msra.mxu0 %v737
        %793 = vmatprep.subr.mxu0 %v736
        %794 = vmatpush2.msra.mxu0 %v735
        %795 = vmatprep.subr.mxu0 %v734
        %796 = vmatpush2.msra.mxu0 %v733
        %797 = vmatprep.subr.mxu0 %v732
        %798 = vmatpush2.msra.mxu0 %v731
        %799 = vmatprep.subr.mxu0 %v730
        %800 = vmatpush2.msra.mxu0 %v729
        %801 = vmatprep.subr.mxu0 %v728
        %802 = vmatpush2.msra.mxu0 %v727
        %803 = vmatprep.subr.mxu0 %v726
        %804 = vmatpush2.msra.mxu0 %v725
        %805 = vmatprep.subr.mxu0 %v724
        %806 = vmatpush2.msra.mxu0 %v723
        %807 = vmatprep.mubr.f32.mxu0 %v741
        %808 = vmatmul.mubr.f32.gmra.mxu0 %v685
        %v809 = vpop.f32.mrf.mxu0
        %v810 = vadd.f32 0.0, %v809
        %v811 = vpop.f32.mrf.mxu0
        %v812 = vadd.f32 0.0, %v811
        %813 = vdwg.mxu0
        %v814 = vld [vmem:[%s8] sm:$0xff]
        %v815 = vld [vmem:[%s8 + $0x8] sm:$0xff]
        %v816 = vmul.f32 %v685, %v814
        %v817 = vmul.f32 %v687, %v815
        %v818 = vld [vmem:[%s9] sm:$0xff]
        %v819 = vld [vmem:[%s9 + $0x8] sm:$0xff]
        %v820 = vmul.f32 %v810, %v818
        %v821 = vmul.f32 %v812, %v819
        %v822 = vadd.f32 %v816, %v820
        %v823 = vadd.f32 %v817, %v821
        %v824 = vlaneseq
        %v825 = vshrl.u32 %v824, 7
        %v826 = vlaneseq
        %v827 = vand.u32 %v826, 127
        %vm828 = vcmp.le.s32.totalorder %v827, %v825
        %v829 = vld [vmem:[%s518] sm:$0xf]
        %v830 = vld [vmem:[%s518 + $0x4] sm:$0xf]
        %v831 = vld [vmem:[%s518 + $0x8] sm:$0xf]
        %v832 = vld [vmem:[%s518 + $0xc] sm:$0xf]
        %v833 = vld [vmem:[%s518 + $0x10] sm:$0xf]
        %v834 = vld [vmem:[%s518 + $0x14] sm:$0xf]
        %v835 = vld [vmem:[%s518 + $0x18] sm:$0xf]
        %v836 = vld [vmem:[%s518 + $0x1c] sm:$0xf]
        %v837 = vld [vmem:[%s518 + $0x20] sm:$0xf]
        %v838 = vld [vmem:[%s518 + $0x24] sm:$0xf]
        %v839 = vld [vmem:[%s518 + $0x28] sm:$0xf]
        %v840 = vld [vmem:[%s518 + $0x2c] sm:$0xf]
        %v841 = vld [vmem:[%s518 + $0x30] sm:$0xf]
        %v842 = vld [vmem:[%s518 + $0x34] sm:$0xf]
        %v843 = vld [vmem:[%s518 + $0x38] sm:$0xf]
        %v844 = vld [vmem:[%s518 + $0x3c] sm:$0xf]
        %v845 = vpack.c.bf16 %v822, %v822
        %v846 = vpack.c.bf16 %v823, %v823
        %v847 = vpack.c.bf16 %v687, %v687
        %vm848 = vcmask 261120
        %v850 = vsel %vm848, %v845, 0
        %v853 = vsel %vm848, %v846, 0
        %855 = vmatprep.subr.bf16.mxu0 0
        %856 = vmatpush1.bf16.xpose.msra.mxu0 0
        %857 = vmatprep.subr.bf16.mxu0 0
        %858 = vmatpush1.bf16.xpose.msra.mxu0 0
        %859 = vmatprep.subr.bf16.mxu0 0
        %860 = vmatpush1.bf16.xpose.msra.mxu0 0
        %861 = vmatprep.subr.bf16.mxu0 0
        %862 = vmatpush1.bf16.xpose.msra.mxu0 0
        %863 = vmatprep.subr.bf16.mxu0 0
        %864 = vmatpush1.bf16.xpose.msra.mxu0 0
        %865 = vmatprep.subr.bf16.mxu0 0
        %866 = vmatpush1.bf16.xpose.msra.mxu0 0
        %867 = vmatprep.subr.bf16.mxu0 0
        %868 = vmatpush1.bf16.xpose.msra.mxu0 0
        %869 = vmatprep.subr.bf16.mxu0 0
        %870 = vmatpush1.bf16.xpose.msra.mxu0 %v853
        %871 = vmatprep.subr.bf16.mxu0 0
        %872 = vmatpush2.bf16.xpose.msra.mxu0 0
        %873 = vmatprep.subr.bf16.mxu0 0
        %874 = vmatpush2.bf16.xpose.msra.mxu0 0
        %875 = vmatprep.subr.bf16.mxu0 0
        %876 = vmatpush2.bf16.xpose.msra.mxu0 0
        %877 = vmatprep.subr.bf16.mxu0 0
        %878 = vmatpush2.bf16.xpose.msra.mxu0 0
        %879 = vmatprep.subr.bf16.mxu0 0
        %880 = vmatpush2.bf16.xpose.msra.mxu0 0
        %881 = vmatprep.subr.bf16.mxu0 0
        %882 = vmatpush2.bf16.xpose.msra.mxu0 0
        %883 = vmatprep.subr.bf16.mxu0 0
        %884 = vmatpush2.bf16.xpose.msra.mxu0 0
        %885 = vmatprep.subr.bf16.mxu0 0
        %886 = vmatpush2.bf16.xpose.msra.mxu0 0
        %887 = vmatprep.mubr.bf16.mxu0 0
        %888 = vmatmul.mubr.bf16.gmra.mxu0 %v850
        %v889 = vpop.f32.mrf.mxu0
        %v890 = vadd.f32 0.0, %v889
        %v891 = vpop.f32.mrf.mxu0
        %v892 = vpop.f32.mrf.mxu0
        %v893 = vpop.f32.mrf.mxu0
        %894 = vdwg.mxu0
        %v895 = vmul.f32 %v890, 0.17677669
        %v896 = vsel %vm828, %v895, -1e+30
        %vm897 = vcmask 64512
        %v898 = vsel %vm897, %v896, -inf
        %899 = vmax.xlane.f32.xlu0 %v898
        %v900 = vpop.xlane.xlu0 %899
        %v901 = vsub.f32 %v896, %v900
        %v902 = vmul.f32 %v901, 1.442695
        %v903 = vpow.pop %v902
        %v904 = vsel %vm897, %v903, 0.0
        %905 = vadd.xlane.f32.xlu0 %v904
        %v906 = vpop.xlane.xlu0 %905
        %v907 = vpack.c.bf16 %v903, %v903
        %909 = vrot.lane.b32.xlu0 %v847, 64
        %v910 = vpop.permute.xlu0 %909
        %v912 = vsel %vm897, %v907, 0
        %vm914 = vcmask 1043456
        %v916 = vsel %vm914, %v910, 0
        %918 = vmatprep.subr.bf16.mxu0 0
        %919 = vmatpush1.bf16.msra.mxu0 0
        %920 = vmatprep.subr.bf16.mxu0 0
        %921 = vmatpush1.bf16.msra.mxu0 0
        %922 = vmatprep.subr.bf16.mxu0 0
        %923 = vmatpush1.bf16.msra.mxu0 0
        %924 = vmatprep.subr.bf16.mxu0 0
        %925 = vmatpush1.bf16.msra.mxu0 0
        %926 = vmatprep.subr.bf16.mxu0 0
        %927 = vmatpush1.bf16.msra.mxu0 0
        %928 = vmatprep.subr.bf16.mxu0 0
        %929 = vmatpush1.bf16.msra.mxu0 0
        %930 = vmatprep.subr.bf16.mxu0 0
        %931 = vmatpush1.bf16.msra.mxu0 0
        %932 = vmatprep.subr.bf16.mxu0 0
        %933 = vmatpush1.bf16.msra.mxu0 %v916
        %934 = vmatprep.subr.bf16.mxu0 0
        %935 = vmatpush2.bf16.msra.mxu0 0
        %936 = vmatprep.subr.bf16.mxu0 0
        %937 = vmatpush2.bf16.msra.mxu0 0
        %938 = vmatprep.subr.bf16.mxu0 0
        %939 = vmatpush2.bf16.msra.mxu0 0
        %940 = vmatprep.subr.bf16.mxu0 0
        %941 = vmatpush2.bf16.msra.mxu0 0
        %942 = vmatprep.subr.bf16.mxu0 0
        %943 = vmatpush2.bf16.msra.mxu0 0
        %944 = vmatprep.subr.bf16.mxu0 0
        %945 = vmatpush2.bf16.msra.mxu0 0
        %946 = vmatprep.subr.bf16.mxu0 0
        %947 = vmatpush2.bf16.msra.mxu0 0
        %948 = vmatprep.subr.bf16.mxu0 0
        %949 = vmatpush2.bf16.msra.mxu0 0
        %950 = vmatprep.mubr.bf16.mxu0 0
        %951 = vmatmul.mubr.bf16.gmra.mxu0 %v912
        %v952 = vpop.f32.mrf.mxu0
        %v953 = vadd.f32 0.0, %v952
        %v954 = vpop.f32.mrf.mxu0
        %v955 = vpop.f32.mrf.mxu0
        %v956 = vpop.f32.mrf.mxu0
        %957 = vdwg.mxu0
        %v958 = vrcp.pop %v906
        %v959 = vmul.f32 %v953, %v958
        %v960 = vpack.c.bf16 %v959, %v959
        %v965 = vunpack.c.l.b16 %v829
        %v966 = vunpack.c.l.b16 %v830
        %v967 = vunpack.c.l.b16 %v831
        %v968 = vunpack.c.l.b16 %v832
        %v969 = vpack.c.b16 %v966, %v965
        %v970 = vpack.c.b16 %v968, %v967
        %v974 = vsel %vm848, %v960, 0
        %976 = vmatprep.subr.bf16.mxu0 0
        %977 = vmatpush1.bf16.msra.mxu0 0
        %978 = vmatprep.subr.bf16.mxu0 0
        %979 = vmatpush1.bf16.msra.mxu0 0
        %980 = vmatprep.subr.bf16.mxu0 0
        %981 = vmatpush1.bf16.msra.mxu0 0
        %982 = vmatprep.subr.bf16.mxu0 0
        %983 = vmatpush1.bf16.msra.mxu0 0
        %984 = vmatprep.subr.bf16.mxu0 0
        %985 = vmatpush1.bf16.msra.mxu0 0
        %986 = vmatprep.subr.bf16.mxu0 0
        %987 = vmatpush1.bf16.msra.mxu0 0
        %988 = vmatprep.subr.bf16.mxu0 0
        %989 = vmatpush1.bf16.msra.mxu0 %v970
        %990 = vmatprep.subr.bf16.mxu0 0
        %991 = vmatpush1.bf16.msra.mxu0 %v969
        %992 = vmatprep.subr.bf16.mxu0 0
        %993 = vmatpush2.bf16.msra.mxu0 0
        %994 = vmatprep.subr.bf16.mxu0 0
        %995 = vmatpush2.bf16.msra.mxu0 0
        %996 = vmatprep.subr.bf16.mxu0 0
        %997 = vmatpush2.bf16.msra.mxu0 0
        %998 = vmatprep.subr.bf16.mxu0 0
        %999 = vmatpush2.bf16.msra.mxu0 0
        %1000 = vmatprep.subr.bf16.mxu0 0
        %1001 = vmatpush2.bf16.msra.mxu0 0
        %1002 = vmatprep.subr.bf16.mxu0 0
        %1003 = vmatpush2.bf16.msra.mxu0 0
        %1004 = vmatprep.subr.bf16.mxu0 0
        %1005 = vmatpush2.bf16.msra.mxu0 0
        %1006 = vmatprep.subr.bf16.mxu0 0
        %1007 = vmatpush2.bf16.msra.mxu0 0
        %1008 = vmatprep.mubr.bf16.mxu0 0
        %1009 = vmatmul.mubr.bf16.gmra.mxu0 %v974
        %v1010 = vpop.f32.mrf.mxu0
        %v1011 = vadd.f32 0.0, %v1010
        %v1012 = vpop.f32.mrf.mxu0
        %v1013 = vpop.f32.mrf.mxu0
        %v1014 = vpop.f32.mrf.mxu0
        %1015 = vdwg.mxu0
        %v1016 = vadd.f32 %v536, %v1011
        %1018 = vrot.lane.b32.xlu0 %v845, 96
        %v1019 = vpop.permute.xlu0 %1018
        %v1021 = vsel %vm848, %v1019, 0
        %1023 = vmatprep.subr.bf16.mxu0 0
        %1024 = vmatpush1.bf16.xpose.msra.mxu0 0
        %1025 = vmatprep.subr.bf16.mxu0 0
        %1026 = vmatpush1.bf16.xpose.msra.mxu0 0
        %1027 = vmatprep.subr.bf16.mxu0 0
        %1028 = vmatpush1.bf16.xpose.msra.mxu0 0
        %1029 = vmatprep.subr.bf16.mxu0 0
        %1030 = vmatpush1.bf16.xpose.msra.mxu0 0
        %1031 = vmatprep.subr.bf16.mxu0 0
        %1032 = vmatpush1.bf16.xpose.msra.mxu0 0
        %1033 = vmatprep.subr.bf16.mxu0 0
        %1034 = vmatpush1.bf16.xpose.msra.mxu0 0
        %1035 = vmatprep.subr.bf16.mxu0 0
        %1036 = vmatpush1.bf16.xpose.msra.mxu0 0
        %1037 = vmatprep.subr.bf16.mxu0 0
        %1038 = vmatpush1.bf16.xpose.msra.mxu0 %v853
        %1039 = vmatprep.subr.bf16.mxu0 0
        %1040 = vmatpush2.bf16.xpose.msra.mxu0 0
        %1041 = vmatprep.subr.bf16.mxu0 0
        %1042 = vmatpush2.bf16.xpose.msra.mxu0 0
        %1043 = vmatprep.subr.bf16.mxu0 0
        %1044 = vmatpush2.bf16.xpose.msra.mxu0 0
        %1045 = vmatprep.subr.bf16.mxu0 0
        %1046 = vmatpush2.bf16.xpose.msra.mxu0 0
        %1047 = vmatprep.subr.bf16.mxu0 0
        %1048 = vmatpush2.bf16.xpose.msra.mxu0 0
        %1049 = vmatprep.subr.bf16.mxu0 0
        %1050 = vmatpush2.bf16.xpose.msra.mxu0 0
        %1051 = vmatprep.subr.bf16.mxu0 0
        %1052 = vmatpush2.bf16.xpose.msra.mxu0 0
        %1053 = vmatprep.subr.bf16.mxu0 0
        %1054 = vmatpush2.bf16.xpose.msra.mxu0 0
        %1055 = vmatprep.mubr.bf16.mxu0 0
        %1056 = vmatmul.mubr.bf16.gmra.mxu0 %v1021
        %v1057 = vpop.f32.mrf.mxu0
        %v1058 = vadd.f32 0.0, %v1057
        %v1059 = vpop.f32.mrf.mxu0
        %v1060 = vpop.f32.mrf.mxu0
        %v1061 = vpop.f32.mrf.mxu0
        %1062 = vdwg.mxu0
        %v1063 = vmul.f32 %v1058, 0.17677669
        %v1064 = vsel %vm828, %v1063, -1e+30
        %v1065 = vsel %vm897, %v1064, -inf
        %1066 = vmax.xlane.f32.xlu0 %v1065
        %v1067 = vpop.xlane.xlu0 %1066
        %v1068 = vsub.f32 %v1064, %v1067
        %v1069 = vmul.f32 %v1068, 1.442695
        %v1070 = vpow.pop %v1069
        %v1071 = vsel %vm897, %v1070, 0.0
        %1072 = vadd.xlane.f32.xlu0 %v1071
        %v1073 = vpop.xlane.xlu0 %1072
        %v1074 = vpack.c.bf16 %v1070, %v1070
        %v1076 = vsel %vm897, %v1074, 0
        %1078 = vmatprep.subr.bf16.mxu0 0
        %1079 = vmatpush1.bf16.msra.mxu0 0
        %1080 = vmatprep.subr.bf16.mxu0 0
        %1081 = vmatpush1.bf16.msra.mxu0 0
        %1082 = vmatprep.subr.bf16.mxu0 0
        %1083 = vmatpush1.bf16.msra.mxu0 0
        %1084 = vmatprep.subr.bf16.mxu0 0
        %1085 = vmatpush1.bf16.msra.mxu0 0
        %1086 = vmatprep.subr.bf16.mxu0 0
        %1087 = vmatpush1.bf16.msra.mxu0 0
        %1088 = vmatprep.subr.bf16.mxu0 0
        %1089 = vmatpush1.bf16.msra.mxu0 0
        %1090 = vmatprep.subr.bf16.mxu0 0
        %1091 = vmatpush1.bf16.msra.mxu0 0
        %1092 = vmatprep.subr.bf16.mxu0 0
        %1093 = vmatpush1.bf16.msra.mxu0 %v916
        %1094 = vmatprep.subr.bf16.mxu0 0
        %1095 = vmatpush2.bf16.msra.mxu0 0
        %1096 = vmatprep.subr.bf16.mxu0 0
        %1097 = vmatpush2.bf16.msra.mxu0 0
        %1098 = vmatprep.subr.bf16.mxu0 0
        %1099 = vmatpush2.bf16.msra.mxu0 0
        %1100 = vmatprep.subr.bf16.mxu0 0
        %1101 = vmatpush2.bf16.msra.mxu0 0
        %1102 = vmatprep.subr.bf16.mxu0 0
        %1103 = vmatpush2.bf16.msra.mxu0 0
        %1104 = vmatprep.subr.bf16.mxu0 0
        %1105 = vmatpush2.bf16.msra.mxu0 0
        %1106 = vmatprep.subr.bf16.mxu0 0
        %1107 = vmatpush2.bf16.msra.mxu0 0
        %1108 = vmatprep.subr.bf16.mxu0 0
        %1109 = vmatpush2.bf16.msra.mxu0 0
        %1110 = vmatprep.mubr.bf16.mxu0 0
        %1111 = vmatmul.mubr.bf16.gmra.mxu0 %v1076
        %v1112 = vpop.f32.mrf.mxu0
        %v1113 = vadd.f32 0.0, %v1112
        %v1114 = vpop.f32.mrf.mxu0
        %v1115 = vpop.f32.mrf.mxu0
        %v1116 = vpop.f32.mrf.mxu0
        %1117 = vdwg.mxu0
        %v1118 = vrcp.pop %v1073
        %v1119 = vmul.f32 %v1113, %v1118
        %v1120 = vpack.c.bf16 %v1119, %v1119
        %v1125 = vunpack.c.l.b16 %v833
        %v1126 = vunpack.c.l.b16 %v834
        %v1127 = vunpack.c.l.b16 %v835
        %v1128 = vunpack.c.l.b16 %v836
        %v1129 = vpack.c.b16 %v1126, %v1125
        %v1130 = vpack.c.b16 %v1128, %v1127
        %v1134 = vsel %vm848, %v1120, 0
        %1136 = vmatprep.subr.bf16.mxu0 0
        %1137 = vmatpush1.bf16.msra.mxu0 0
        %1138 = vmatprep.subr.bf16.mxu0 0
        %1139 = vmatpush1.bf16.msra.mxu0 0
        %1140 = vmatprep.subr.bf16.mxu0 0
        %1141 = vmatpush1.bf16.msra.mxu0 0
        %1142 = vmatprep.subr.bf16.mxu0 0
        %1143 = vmatpush1.bf16.msra.mxu0 0
        %1144 = vmatprep.subr.bf16.mxu0 0
        %1145 = vmatpush1.bf16.msra.mxu0 0
        %1146 = vmatprep.subr.bf16.mxu0 0
        %1147 = vmatpush1.bf16.msra.mxu0 0
        %1148 = vmatprep.subr.bf16.mxu0 0
        %1149 = vmatpush1.bf16.msra.mxu0 %v1130
        %1150 = vmatprep.subr.bf16.mxu0 0
        %1151 = vmatpush1.bf16.msra.mxu0 %v1129
        %1152 = vmatprep.subr.bf16.mxu0 0
        %1153 = vmatpush2.bf16.msra.mxu0 0
        %1154 = vmatprep.subr.bf16.mxu0 0
        %1155 = vmatpush2.bf16.msra.mxu0 0
        %1156 = vmatprep.subr.bf16.mxu0 0
        %1157 = vmatpush2.bf16.msra.mxu0 0
        %1158 = vmatprep.subr.bf16.mxu0 0
        %1159 = vmatpush2.bf16.msra.mxu0 0
        %1160 = vmatprep.subr.bf16.mxu0 0
        %1161 = vmatpush2.bf16.msra.mxu0 0
        %1162 = vmatprep.subr.bf16.mxu0 0
        %1163 = vmatpush2.bf16.msra.mxu0 0
        %1164 = vmatprep.subr.bf16.mxu0 0
        %1165 = vmatpush2.bf16.msra.mxu0 0
        %1166 = vmatprep.subr.bf16.mxu0 0
        %1167 = vmatpush2.bf16.msra.mxu0 0
        %1168 = vmatprep.mubr.bf16.mxu0 0
        %1169 = vmatmul.mubr.bf16.gmra.mxu0 %v1134
        %v1170 = vpop.f32.mrf.mxu0
        %v1171 = vadd.f32 0.0, %v1170
        %v1172 = vpop.f32.mrf.mxu0
        %v1173 = vpop.f32.mrf.mxu0
        %v1174 = vpop.f32.mrf.mxu0
        %1175 = vdwg.mxu0
        %v1176 = vadd.f32 %v1016, %v1171
        %1177 = vrot.lane.b32.xlu0 %v845, 64
        %v1178 = vpop.permute.xlu0 %1177
        %1180 = vrot.lane.b32.xlu0 %v846, 96
        %v1181 = vpop.permute.xlu0 %1180
        %v1183 = vsel %vm848, %v1178, 0
        %v1186 = vsel %vm848, %v1181, 0
        %1188 = vmatprep.subr.bf16.mxu0 0
        %1189 = vmatpush1.bf16.xpose.msra.mxu0 0
        %1190 = vmatprep.subr.bf16.mxu0 0
        %1191 = vmatpush1.bf16.xpose.msra.mxu0 0
        %1192 = vmatprep.subr.bf16.mxu0 0
        %1193 = vmatpush1.bf16.xpose.msra.mxu0 0
        %1194 = vmatprep.subr.bf16.mxu0 0
        %1195 = vmatpush1.bf16.xpose.msra.mxu0 0
        %1196 = vmatprep.subr.bf16.mxu0 0
        %1197 = vmatpush1.bf16.xpose.msra.mxu0 0
        %1198 = vmatprep.subr.bf16.mxu0 0
        %1199 = vmatpush1.bf16.xpose.msra.mxu0 0
        %1200 = vmatprep.subr.bf16.mxu0 0
        %1201 = vmatpush1.bf16.xpose.msra.mxu0 0
        %1202 = vmatprep.subr.bf16.mxu0 0
        %1203 = vmatpush1.bf16.xpose.msra.mxu0 %v1186
        %1204 = vmatprep.subr.bf16.mxu0 0
        %1205 = vmatpush2.bf16.xpose.msra.mxu0 0
        %1206 = vmatprep.subr.bf16.mxu0 0
        %1207 = vmatpush2.bf16.xpose.msra.mxu0 0
        %1208 = vmatprep.subr.bf16.mxu0 0
        %1209 = vmatpush2.bf16.xpose.msra.mxu0 0
        %1210 = vmatprep.subr.bf16.mxu0 0
        %1211 = vmatpush2.bf16.xpose.msra.mxu0 0
        %1212 = vmatprep.subr.bf16.mxu0 0
        %1213 = vmatpush2.bf16.xpose.msra.mxu0 0
        %1214 = vmatprep.subr.bf16.mxu0 0
        %1215 = vmatpush2.bf16.xpose.msra.mxu0 0
        %1216 = vmatprep.subr.bf16.mxu0 0
        %1217 = vmatpush2.bf16.xpose.msra.mxu0 0
        %1218 = vmatprep.subr.bf16.mxu0 0
        %1219 = vmatpush2.bf16.xpose.msra.mxu0 0
        %1220 = vmatprep.mubr.bf16.mxu0 0
        %1221 = vmatmul.mubr.bf16.gmra.mxu0 %v1183
        %v1222 = vpop.f32.mrf.mxu0
        %v1223 = vadd.f32 0.0, %v1222
        %v1224 = vpop.f32.mrf.mxu0
        %v1225 = vpop.f32.mrf.mxu0
        %v1226 = vpop.f32.mrf.mxu0
        %1227 = vdwg.mxu0
        %v1228 = vmul.f32 %v1223, 0.17677669
        %v1229 = vsel %vm828, %v1228, -1e+30
        %v1230 = vsel %vm897, %v1229, -inf
        %1231 = vmax.xlane.f32.xlu0 %v1230
        %v1232 = vpop.xlane.xlu0 %1231
        %v1233 = vsub.f32 %v1229, %v1232
        %v1234 = vmul.f32 %v1233, 1.442695
        %v1235 = vpow.pop %v1234
        %v1236 = vsel %vm897, %v1235, 0.0
        %1237 = vadd.xlane.f32.xlu0 %v1236
        %v1238 = vpop.xlane.xlu0 %1237
        %v1239 = vpack.c.bf16 %v1235, %v1235
        %1240 = vrot.lane.b32.xlu0 %v847, 32
        %v1241 = vpop.permute.xlu0 %1240
        %v1243 = vsel %vm897, %v1239, 0
        %v1246 = vsel %vm914, %v1241, 0
        %1248 = vmatprep.subr.bf16.mxu0 0
        %1249 = vmatpush1.bf16.msra.mxu0 0
        %1250 = vmatprep.subr.bf16.mxu0 0
        %1251 = vmatpush1.bf16.msra.mxu0 0
        %1252 = vmatprep.subr.bf16.mxu0 0
        %1253 = vmatpush1.bf16.msra.mxu0 0
        %1254 = vmatprep.subr.bf16.mxu0 0
        %1255 = vmatpush1.bf16.msra.mxu0 0
        %1256 = vmatprep.subr.bf16.mxu0 0
        %1257 = vmatpush1.bf16.msra.mxu0 0
        %1258 = vmatprep.subr.bf16.mxu0 0
        %1259 = vmatpush1.bf16.msra.mxu0 0
        %1260 = vmatprep.subr.bf16.mxu0 0
        %1261 = vmatpush1.bf16.msra.mxu0 0
        %1262 = vmatprep.subr.bf16.mxu0 0
        %1263 = vmatpush1.bf16.msra.mxu0 %v1246
        %1264 = vmatprep.subr.bf16.mxu0 0
        %1265 = vmatpush2.bf16.msra.mxu0 0
        %1266 = vmatprep.subr.bf16.mxu0 0
        %1267 = vmatpush2.bf16.msra.mxu0 0
        %1268 = vmatprep.subr.bf16.mxu0 0
        %1269 = vmatpush2.bf16.msra.mxu0 0
        %1270 = vmatprep.subr.bf16.mxu0 0
        %1271 = vmatpush2.bf16.msra.mxu0 0
        %1272 = vmatprep.subr.bf16.mxu0 0
        %1273 = vmatpush2.bf16.msra.mxu0 0
        %1274 = vmatprep.subr.bf16.mxu0 0
        %1275 = vmatpush2.bf16.msra.mxu0 0
        %1276 = vmatprep.subr.bf16.mxu0 0
        %1277 = vmatpush2.bf16.msra.mxu0 0
        %1278 = vmatprep.subr.bf16.mxu0 0
        %1279 = vmatpush2.bf16.msra.mxu0 0
        %1280 = vmatprep.mubr.bf16.mxu0 0
        %1281 = vmatmul.mubr.bf16.gmra.mxu0 %v1243
        %v1282 = vpop.f32.mrf.mxu0
        %v1283 = vadd.f32 0.0, %v1282
        %v1284 = vpop.f32.mrf.mxu0
        %v1285 = vpop.f32.mrf.mxu0
        %v1286 = vpop.f32.mrf.mxu0
        %1287 = vdwg.mxu0
        %v1288 = vrcp.pop %v1238
        %v1289 = vmul.f32 %v1283, %v1288
        %v1290 = vpack.c.bf16 %v1289, %v1289
        %v1295 = vunpack.c.l.b16 %v837
        %v1296 = vunpack.c.l.b16 %v838
        %v1297 = vunpack.c.l.b16 %v839
        %v1298 = vunpack.c.l.b16 %v840
        %v1299 = vpack.c.b16 %v1296, %v1295
        %v1300 = vpack.c.b16 %v1298, %v1297
        %v1304 = vsel %vm848, %v1290, 0
        %1306 = vmatprep.subr.bf16.mxu0 0
        %1307 = vmatpush1.bf16.msra.mxu0 0
        %1308 = vmatprep.subr.bf16.mxu0 0
        %1309 = vmatpush1.bf16.msra.mxu0 0
        %1310 = vmatprep.subr.bf16.mxu0 0
        %1311 = vmatpush1.bf16.msra.mxu0 0
        %1312 = vmatprep.subr.bf16.mxu0 0
        %1313 = vmatpush1.bf16.msra.mxu0 0
        %1314 = vmatprep.subr.bf16.mxu0 0
        %1315 = vmatpush1.bf16.msra.mxu0 0
        %1316 = vmatprep.subr.bf16.mxu0 0
        %1317 = vmatpush1.bf16.msra.mxu0 0
        %1318 = vmatprep.subr.bf16.mxu0 0
        %1319 = vmatpush1.bf16.msra.mxu0 %v1300
        %1320 = vmatprep.subr.bf16.mxu0 0
        %1321 = vmatpush1.bf16.msra.mxu0 %v1299
        %1322 = vmatprep.subr.bf16.mxu0 0
        %1323 = vmatpush2.bf16.msra.mxu0 0
        %1324 = vmatprep.subr.bf16.mxu0 0
        %1325 = vmatpush2.bf16.msra.mxu0 0
        %1326 = vmatprep.subr.bf16.mxu0 0
        %1327 = vmatpush2.bf16.msra.mxu0 0
        %1328 = vmatprep.subr.bf16.mxu0 0
        %1329 = vmatpush2.bf16.msra.mxu0 0
        %1330 = vmatprep.subr.bf16.mxu0 0
        %1331 = vmatpush2.bf16.msra.mxu0 0
        %1332 = vmatprep.subr.bf16.mxu0 0
        %1333 = vmatpush2.bf16.msra.mxu0 0
        %1334 = vmatprep.subr.bf16.mxu0 0
        %1335 = vmatpush2.bf16.msra.mxu0 0
        %1336 = vmatprep.subr.bf16.mxu0 0
        %1337 = vmatpush2.bf16.msra.mxu0 0
        %1338 = vmatprep.mubr.bf16.mxu0 0
        %1339 = vmatmul.mubr.bf16.gmra.mxu0 %v1304
        %v1340 = vpop.f32.mrf.mxu0
        %v1341 = vadd.f32 0.0, %v1340
        %v1342 = vpop.f32.mrf.mxu0
        %v1343 = vpop.f32.mrf.mxu0
        %v1344 = vpop.f32.mrf.mxu0
        %1345 = vdwg.mxu0
        %v1346 = vadd.f32 %v1176, %v1341
        %1347 = vrot.lane.b32.xlu0 %v845, 32
        %v1348 = vpop.permute.xlu0 %1347
        %v1350 = vsel %vm848, %v1348, 0
        %1352 = vmatprep.subr.bf16.mxu0 0
        %1353 = vmatpush1.bf16.xpose.msra.mxu0 0
        %1354 = vmatprep.subr.bf16.mxu0 0
        %1355 = vmatpush1.bf16.xpose.msra.mxu0 0
        %1356 = vmatprep.subr.bf16.mxu0 0
        %1357 = vmatpush1.bf16.xpose.msra.mxu0 0
        %1358 = vmatprep.subr.bf16.mxu0 0
        %1359 = vmatpush1.bf16.xpose.msra.mxu0 0
        %1360 = vmatprep.subr.bf16.mxu0 0
        %1361 = vmatpush1.bf16.xpose.msra.mxu0 0
        %1362 = vmatprep.subr.bf16.mxu0 0
        %1363 = vmatpush1.bf16.xpose.msra.mxu0 0
        %1364 = vmatprep.subr.bf16.mxu0 0
        %1365 = vmatpush1.bf16.xpose.msra.mxu0 0
        %1366 = vmatprep.subr.bf16.mxu0 0
        %1367 = vmatpush1.bf16.xpose.msra.mxu0 %v1186
        %1368 = vmatprep.subr.bf16.mxu0 0
        %1369 = vmatpush2.bf16.xpose.msra.mxu0 0
        %1370 = vmatprep.subr.bf16.mxu0 0
        %1371 = vmatpush2.bf16.xpose.msra.mxu0 0
        %1372 = vmatprep.subr.bf16.mxu0 0
        %1373 = vmatpush2.bf16.xpose.msra.mxu0 0
        %1374 = vmatprep.subr.bf16.mxu0 0
        %1375 = vmatpush2.bf16.xpose.msra.mxu0 0
        %1376 = vmatprep.subr.bf16.mxu0 0
        %1377 = vmatpush2.bf16.xpose.msra.mxu0 0
        %1378 = vmatprep.subr.bf16.mxu0 0
        %1379 = vmatpush2.bf16.xpose.msra.mxu0 0
        %1380 = vmatprep.subr.bf16.mxu0 0
        %1381 = vmatpush2.bf16.xpose.msra.mxu0 0
        %1382 = vmatprep.subr.bf16.mxu0 0
        %1383 = vmatpush2.bf16.xpose.msra.mxu0 0
        %1384 = vmatprep.mubr.bf16.mxu0 0
        %1385 = vmatmul.mubr.bf16.gmra.mxu0 %v1350
        %v1386 = vpop.f32.mrf.mxu0
        %v1387 = vadd.f32 0.0, %v1386
        %v1388 = vpop.f32.mrf.mxu0
        %v1389 = vpop.f32.mrf.mxu0
        %v1390 = vpop.f32.mrf.mxu0
        %1391 = vdwg.mxu0
        %v1392 = vmul.f32 %v1387, 0.17677669
        %v1393 = vsel %vm828, %v1392, -1e+30
        %v1394 = vsel %vm897, %v1393, -inf
        %1395 = vmax.xlane.f32.xlu0 %v1394
        %v1396 = vpop.xlane.xlu0 %1395
        %v1397 = vsub.f32 %v1393, %v1396
        %v1398 = vmul.f32 %v1397, 1.442695
        %v1399 = vpow.pop %v1398
        %v1400 = vsel %vm897, %v1399, 0.0
        %1401 = vadd.xlane.f32.xlu0 %v1400
        %v1402 = vpop.xlane.xlu0 %1401
        %v1403 = vpack.c.bf16 %v1399, %v1399
        %v1405 = vsel %vm897, %v1403, 0
        %1407 = vmatprep.subr.bf16.mxu0 0
        %1408 = vmatpush1.bf16.msra.mxu0 0
        %1409 = vmatprep.subr.bf16.mxu0 0
        %1410 = vmatpush1.bf16.msra.mxu0 0
        %1411 = vmatprep.subr.bf16.mxu0 0
        %1412 = vmatpush1.bf16.msra.mxu0 0
        %1413 = vmatprep.subr.bf16.mxu0 0
        %1414 = vmatpush1.bf16.msra.mxu0 0
        %1415 = vmatprep.subr.bf16.mxu0 0
        %1416 = vmatpush1.bf16.msra.mxu0 0
        %1417 = vmatprep.subr.bf16.mxu0 0
        %1418 = vmatpush1.bf16.msra.mxu0 0
        %1419 = vmatprep.subr.bf16.mxu0 0
        %1420 = vmatpush1.bf16.msra.mxu0 0
        %1421 = vmatprep.subr.bf16.mxu0 0
        %1422 = vmatpush1.bf16.msra.mxu0 %v1246
        %1423 = vmatprep.subr.bf16.mxu0 0
        %1424 = vmatpush2.bf16.msra.mxu0 0
        %1425 = vmatprep.subr.bf16.mxu0 0
        %1426 = vmatpush2.bf16.msra.mxu0 0
        %1427 = vmatprep.subr.bf16.mxu0 0
        %1428 = vmatpush2.bf16.msra.mxu0 0
        %1429 = vmatprep.subr.bf16.mxu0 0
        %1430 = vmatpush2.bf16.msra.mxu0 0
        %1431 = vmatprep.subr.bf16.mxu0 0
        %1432 = vmatpush2.bf16.msra.mxu0 0
        %1433 = vmatprep.subr.bf16.mxu0 0
        %1434 = vmatpush2.bf16.msra.mxu0 0
        %1435 = vmatprep.subr.bf16.mxu0 0
        %1436 = vmatpush2.bf16.msra.mxu0 0
        %1437 = vmatprep.subr.bf16.mxu0 0
        %1438 = vmatpush2.bf16.msra.mxu0 0
        %1439 = vmatprep.mubr.bf16.mxu0 0
        %1440 = vmatmul.mubr.bf16.gmra.mxu0 %v1405
        %v1441 = vpop.f32.mrf.mxu0
        %v1442 = vadd.f32 0.0, %v1441
        %v1443 = vpop.f32.mrf.mxu0
        %v1444 = vpop.f32.mrf.mxu0
        %v1445 = vpop.f32.mrf.mxu0
        %1446 = vdwg.mxu0
        %v1447 = vrcp.pop %v1402
        %v1448 = vmul.f32 %v1442, %v1447
        %v1449 = vpack.c.bf16 %v1448, %v1448
        %v1454 = vunpack.c.l.b16 %v841
        %v1455 = vunpack.c.l.b16 %v842
        %v1456 = vunpack.c.l.b16 %v843
        %v1457 = vunpack.c.l.b16 %v844
        %v1458 = vpack.c.b16 %v1455, %v1454
        %v1459 = vpack.c.b16 %v1457, %v1456
        %v1463 = vsel %vm848, %v1449, 0
        %1465 = vmatprep.subr.bf16.mxu0 0
        %1466 = vmatpush1.bf16.msra.mxu0 0
        %1467 = vmatprep.subr.bf16.mxu0 0
        %1468 = vmatpush1.bf16.msra.mxu0 0
        %1469 = vmatprep.subr.bf16.mxu0 0
        %1470 = vmatpush1.bf16.msra.mxu0 0
        %1471 = vmatprep.subr.bf16.mxu0 0
        %1472 = vmatpush1.bf16.msra.mxu0 0
        %1473 = vmatprep.subr.bf16.mxu0 0
        %1474 = vmatpush1.bf16.msra.mxu0 0
        %1475 = vmatprep.subr.bf16.mxu0 0
        %1476 = vmatpush1.bf16.msra.mxu0 0
        %1477 = vmatprep.subr.bf16.mxu0 0
        %1478 = vmatpush1.bf16.msra.mxu0 %v1459
        %1479 = vmatprep.subr.bf16.mxu0 0
        %1480 = vmatpush1.bf16.msra.mxu0 %v1458
        %1481 = vmatprep.subr.bf16.mxu0 0
        %1482 = vmatpush2.bf16.msra.mxu0 0
        %1483 = vmatprep.subr.bf16.mxu0 0
        %1484 = vmatpush2.bf16.msra.mxu0 0
        %1485 = vmatprep.subr.bf16.mxu0 0
        %1486 = vmatpush2.bf16.msra.mxu0 0
        %1487 = vmatprep.subr.bf16.mxu0 0
        %1488 = vmatpush2.bf16.msra.mxu0 0
        %1489 = vmatprep.subr.bf16.mxu0 0
        %1490 = vmatpush2.bf16.msra.mxu0 0
        %1491 = vmatprep.subr.bf16.mxu0 0
        %1492 = vmatpush2.bf16.msra.mxu0 0
        %1493 = vmatprep.subr.bf16.mxu0 0
        %1494 = vmatpush2.bf16.msra.mxu0 0
        %1495 = vmatprep.subr.bf16.mxu0 0
        %1496 = vmatpush2.bf16.msra.mxu0 0
        %1497 = vmatprep.mubr.bf16.mxu0 0
        %1498 = vmatmul.mubr.bf16.gmra.mxu0 %v1463
        %v1499 = vpop.f32.mrf.mxu0
        %v1500 = vadd.f32 0.0, %v1499
        %v1501 = vpop.f32.mrf.mxu0
        %v1502 = vpop.f32.mrf.mxu0
        %v1503 = vpop.f32.mrf.mxu0
        %1504 = vdwg.mxu0
        %v1505 = vadd.f32 %v1346, %v1500
        %v1506 = vmul.f32 %v1505, %v1505
        %1507 = vadd.xlane.f32.xlu0 %v1506
        %v1508 = vpop.xlane.xlu0 %1507
        %v1509 = vmul.f32 %v1508, %v540
        %v1510 = vadd.f32 %v1509, 1e-05
        %v1511 = vrsqrt.pop %v1510
        %v1512 = vmul.f32 %v1505, %v1511
        %v1513 = vld [vmem:[%s508] sm:$0x1]
        %v1515 = vlaneseq
        %v1516 = vshrl.u32 %v1515, 7
        %v1517 = vsub.s32 0, %v1516
        %v1518 = vrot.slane %v1513, %v1517
        %v1520 = vmul.f32 %v1512, %v1518
        %v1521 = vpack.c.bf16 %v1520, %v1520
        %v1522 = vld [vmem:[%s523] sm:$0xff]
        %v1523 = vld [vmem:[%s523 + $0x8] sm:$0xff]
        %v1524 = vld [vmem:[%s523 + $0x10] sm:$0xff]
        %v1525 = vld [vmem:[%s523 + $0x18] sm:$0xff]
        %v1526 = vld [vmem:[%s523 + $0x20] sm:$0xff]
        %v1527 = vld [vmem:[%s523 + $0x28] sm:$0xff]
        %v1528 = vld [vmem:[%s523 + $0x30] sm:$0xff]
        %v1529 = vld [vmem:[%s523 + $0x38] sm:$0xff]
        %v1530 = vld [vmem:[%s523 + $0x40] sm:$0xff]
        %v1531 = vld [vmem:[%s523 + $0x48] sm:$0xff]
        %v1532 = vld [vmem:[%s523 + $0x50] sm:$0xff]
        %v1533 = vld [vmem:[%s523 + $0x58] sm:$0xff]
        %v1534 = vld [vmem:[%s523 + $0x60] sm:$0xff]
        %v1535 = vld [vmem:[%s523 + $0x68] sm:$0xff]
        %v1536 = vld [vmem:[%s523 + $0x70] sm:$0xff]
        %v1537 = vld [vmem:[%s523 + $0x78] sm:$0xff]
        %v1538 = vld [vmem:[%s523 + $0x80] sm:$0xff]
        %v1539 = vld [vmem:[%s523 + $0x88] sm:$0xff]
        %v1540 = vld [vmem:[%s523 + $0x90] sm:$0xff]
        %v1541 = vld [vmem:[%s523 + $0x98] sm:$0xff]
        %v1542 = vld [vmem:[%s523 + $0xa0] sm:$0xff]
        %v1543 = vld [vmem:[%s523 + $0xa8] sm:$0xff]
        %v1544 = vld [vmem:[%s523 + $0xb0] sm:$0xff]
        %v1545 = vld [vmem:[%s523 + $0xb8] sm:$0xff]
        %v1546 = vld [vmem:[%s523 + $0xc0] sm:$0xff]
        %v1547 = vld [vmem:[%s523 + $0xc8] sm:$0xff]
        %v1548 = vld [vmem:[%s523 + $0xd0] sm:$0xff]
        %v1549 = vld [vmem:[%s523 + $0xd8] sm:$0xff]
        %v1550 = vld [vmem:[%s523 + $0xe0] sm:$0xff]
        %v1551 = vld [vmem:[%s523 + $0xe8] sm:$0xff]
        %v1552 = vld [vmem:[%s523 + $0xf0] sm:$0xff]
        %v1553 = vld [vmem:[%s523 + $0xf8] sm:$0xff]
        %v1586 = vunpack.c.l.b16 %v1522
        %v1587 = vunpack.c.h.b16 %v1522
        %v1588 = vunpack.c.l.b16 %v1523
        %v1589 = vunpack.c.h.b16 %v1523
        %v1590 = vunpack.c.l.b16 %v1524
        %v1591 = vunpack.c.h.b16 %v1524
        %v1592 = vunpack.c.l.b16 %v1525
        %v1593 = vunpack.c.h.b16 %v1525
        %v1594 = vunpack.c.l.b16 %v1526
        %v1595 = vunpack.c.h.b16 %v1526
        %v1596 = vunpack.c.l.b16 %v1527
        %v1597 = vunpack.c.h.b16 %v1527
        %v1598 = vunpack.c.l.b16 %v1528
        %v1599 = vunpack.c.h.b16 %v1528
        %v1600 = vunpack.c.l.b16 %v1529
        %v1601 = vunpack.c.h.b16 %v1529
        %v1602 = vunpack.c.l.b16 %v1530
        %v1603 = vunpack.c.h.b16 %v1530
        %v1604 = vunpack.c.l.b16 %v1531
        %v1605 = vunpack.c.h.b16 %v1531
        %v1606 = vunpack.c.l.b16 %v1532
        %v1607 = vunpack.c.h.b16 %v1532
        %v1608 = vunpack.c.l.b16 %v1533
        %v1609 = vunpack.c.h.b16 %v1533
        %v1610 = vunpack.c.l.b16 %v1534
        %v1611 = vunpack.c.h.b16 %v1534
        %v1612 = vunpack.c.l.b16 %v1535
        %v1613 = vunpack.c.h.b16 %v1535
        %v1614 = vunpack.c.l.b16 %v1536
        %v1615 = vunpack.c.h.b16 %v1536
        %v1616 = vunpack.c.l.b16 %v1537
        %v1617 = vunpack.c.h.b16 %v1537
        %v1618 = vunpack.c.l.b16 %v1538
        %v1619 = vunpack.c.h.b16 %v1538
        %v1620 = vunpack.c.l.b16 %v1539
        %v1621 = vunpack.c.h.b16 %v1539
        %v1622 = vunpack.c.l.b16 %v1540
        %v1623 = vunpack.c.h.b16 %v1540
        %v1624 = vunpack.c.l.b16 %v1541
        %v1625 = vunpack.c.h.b16 %v1541
        %v1626 = vunpack.c.l.b16 %v1542
        %v1627 = vunpack.c.h.b16 %v1542
        %v1628 = vunpack.c.l.b16 %v1543
        %v1629 = vunpack.c.h.b16 %v1543
        %v1630 = vunpack.c.l.b16 %v1544
        %v1631 = vunpack.c.h.b16 %v1544
        %v1632 = vunpack.c.l.b16 %v1545
        %v1633 = vunpack.c.h.b16 %v1545
        %v1634 = vunpack.c.l.b16 %v1546
        %v1635 = vunpack.c.h.b16 %v1546
        %v1636 = vunpack.c.l.b16 %v1547
        %v1637 = vunpack.c.h.b16 %v1547
        %v1638 = vunpack.c.l.b16 %v1548
        %v1639 = vunpack.c.h.b16 %v1548
        %v1640 = vunpack.c.l.b16 %v1549
        %v1641 = vunpack.c.h.b16 %v1549
        %v1642 = vunpack.c.l.b16 %v1550
        %v1643 = vunpack.c.h.b16 %v1550
        %v1644 = vunpack.c.l.b16 %v1551
        %v1645 = vunpack.c.h.b16 %v1551
        %v1646 = vunpack.c.l.b16 %v1552
        %v1647 = vunpack.c.h.b16 %v1552
        %v1648 = vunpack.c.l.b16 %v1553
        %v1649 = vunpack.c.h.b16 %v1553
        %v1650 = vpack.c.b16 %v1590, %v1586
        %v1651 = vpack.c.b16 %v1591, %v1587
        %v1652 = vpack.c.b16 %v1592, %v1588
        %v1653 = vpack.c.b16 %v1593, %v1589
        %v1654 = vpack.c.b16 %v1598, %v1594
        %v1655 = vpack.c.b16 %v1599, %v1595
        %v1656 = vpack.c.b16 %v1600, %v1596
        %v1657 = vpack.c.b16 %v1601, %v1597
        %v1658 = vpack.c.b16 %v1606, %v1602
        %v1659 = vpack.c.b16 %v1607, %v1603
        %v1660 = vpack.c.b16 %v1608, %v1604
        %v1661 = vpack.c.b16 %v1609, %v1605
        %v1662 = vpack.c.b16 %v1614, %v1610
        %v1663 = vpack.c.b16 %v1615, %v1611
        %v1664 = vpack.c.b16 %v1616, %v1612
        %v1665 = vpack.c.b16 %v1617, %v1613
        %v1666 = vpack.c.b16 %v1622, %v1618
        %v1667 = vpack.c.b16 %v1623, %v1619
        %v1668 = vpack.c.b16 %v1624, %v1620
        %v1669 = vpack.c.b16 %v1625, %v1621
        %v1670 = vpack.c.b16 %v1630, %v1626
        %v1671 = vpack.c.b16 %v1631, %v1627
        %v1672 = vpack.c.b16 %v1632, %v1628
        %v1673 = vpack.c.b16 %v1633, %v1629
        %v1674 = vpack.c.b16 %v1638, %v1634
        %v1675 = vpack.c.b16 %v1639, %v1635
        %v1676 = vpack.c.b16 %v1640, %v1636
        %v1677 = vpack.c.b16 %v1641, %v1637
        %v1678 = vpack.c.b16 %v1646, %v1642
        %v1679 = vpack.c.b16 %v1647, %v1643
        %v1680 = vpack.c.b16 %v1648, %v1644
        %v1681 = vpack.c.b16 %v1649, %v1645
        %1714 = vmatprep.subr.bf16.mxu0 %v1679
        %1715 = vmatpush1.bf16.msra.mxu0 %v1678
        %1716 = vmatprep.subr.bf16.mxu0 %v1675
        %1717 = vmatpush1.bf16.msra.mxu0 %v1674
        %1718 = vmatprep.subr.bf16.mxu0 %v1671
        %1719 = vmatpush1.bf16.msra.mxu0 %v1670
        %1720 = vmatprep.subr.bf16.mxu0 %v1667
        %1721 = vmatpush1.bf16.msra.mxu0 %v1666
        %1722 = vmatprep.subr.bf16.mxu0 %v1663
        %1723 = vmatpush1.bf16.msra.mxu0 %v1662
        %1724 = vmatprep.subr.bf16.mxu0 %v1659
        %1725 = vmatpush1.bf16.msra.mxu0 %v1658
        %1726 = vmatprep.subr.bf16.mxu0 %v1655
        %1727 = vmatpush1.bf16.msra.mxu0 %v1654
        %1728 = vmatprep.subr.bf16.mxu0 %v1651
        %1729 = vmatpush1.bf16.msra.mxu0 %v1650
        %1730 = vmatprep.subr.bf16.mxu0 0
        %1731 = vmatpush2.bf16.msra.mxu0 0
        %1732 = vmatprep.subr.bf16.mxu0 0
        %1733 = vmatpush2.bf16.msra.mxu0 0
        %1734 = vmatprep.subr.bf16.mxu0 0
        %1735 = vmatpush2.bf16.msra.mxu0 0
        %1736 = vmatprep.subr.bf16.mxu0 0
        %1737 = vmatpush2.bf16.msra.mxu0 0
        %1738 = vmatprep.subr.bf16.mxu0 0
        %1739 = vmatpush2.bf16.msra.mxu0 0
        %1740 = vmatprep.subr.bf16.mxu0 0
        %1741 = vmatpush2.bf16.msra.mxu0 0
        %1742 = vmatprep.subr.bf16.mxu0 0
        %1743 = vmatpush2.bf16.msra.mxu0 0
        %1744 = vmatprep.subr.bf16.mxu0 0
        %1745 = vmatpush2.bf16.msra.mxu0 0
        %1746 = vmatprep.mubr.bf16.mxu0 0
        %1747 = vmatmul.mubr.bf16.gmra.mxu0 %v1521
        %v1748 = vpop.f32.mrf.mxu0
        %v1749 = vadd.f32 0.0, %v1748
        %v1750 = vpop.f32.mrf.mxu0
        %v1751 = vadd.f32 0.0, %v1750
        %v1752 = vpop.f32.mrf.mxu0
        %v1753 = vpop.f32.mrf.mxu0
        %1754 = vdwg.mxu0
        %1755 = vmatprep.subr.bf16.mxu0 %v1681
        %1756 = vmatpush1.bf16.msra.mxu0 %v1680
        %1757 = vmatprep.subr.bf16.mxu0 %v1677
        %1758 = vmatpush1.bf16.msra.mxu0 %v1676
        %1759 = vmatprep.subr.bf16.mxu0 %v1673
        %1760 = vmatpush1.bf16.msra.mxu0 %v1672
        %1761 = vmatprep.subr.bf16.mxu0 %v1669
        %1762 = vmatpush1.bf16.msra.mxu0 %v1668
        %1763 = vmatprep.subr.bf16.mxu0 %v1665
        %1764 = vmatpush1.bf16.msra.mxu0 %v1664
        %1765 = vmatprep.subr.bf16.mxu0 %v1661
        %1766 = vmatpush1.bf16.msra.mxu0 %v1660
        %1767 = vmatprep.subr.bf16.mxu0 %v1657
        %1768 = vmatpush1.bf16.msra.mxu0 %v1656
        %1769 = vmatprep.subr.bf16.mxu0 %v1653
        %1770 = vmatpush1.bf16.msra.mxu0 %v1652
        %1771 = vmatprep.subr.bf16.mxu0 0
        %1772 = vmatpush2.bf16.msra.mxu0 0
        %1773 = vmatprep.subr.bf16.mxu0 0
        %1774 = vmatpush2.bf16.msra.mxu0 0
        %1775 = vmatprep.subr.bf16.mxu0 0
        %1776 = vmatpush2.bf16.msra.mxu0 0
        %1777 = vmatprep.subr.bf16.mxu0 0
        %1778 = vmatpush2.bf16.msra.mxu0 0
        %1779 = vmatprep.subr.bf16.mxu0 0
        %1780 = vmatpush2.bf16.msra.mxu0 0
        %1781 = vmatprep.subr.bf16.mxu0 0
        %1782 = vmatpush2.bf16.msra.mxu0 0
        %1783 = vmatprep.subr.bf16.mxu0 0
        %1784 = vmatpush2.bf16.msra.mxu0 0
        %1785 = vmatprep.subr.bf16.mxu0 0
        %1786 = vmatpush2.bf16.msra.mxu0 0
        %1787 = vmatprep.mubr.bf16.mxu0 0
        %1788 = vmatmul.mubr.bf16.gmra.mxu0 %v1521
        %v1789 = vpop.f32.mrf.mxu0
        %v1790 = vadd.f32 0.0, %v1789
        %v1791 = vpop.f32.mrf.mxu0
        %v1792 = vadd.f32 0.0, %v1791
        %v1793 = vpop.f32.mrf.mxu0
        %v1794 = vpop.f32.mrf.mxu0
        %1795 = vdwg.mxu0
        %v1796 = vxor.u32 %v1749, 2147483648
        %v1797 = vxor.u32 %v1751, 2147483648
        %v1798 = vmul.f32 %v1796, 1.442695
        %v1799 = vpow.pop %v1798
        %v1800 = vmul.f32 %v1797, 1.442695
        %v1801 = vpow.pop %v1800
        %v1802 = vadd.f32 %v1799, 1.0
        %v1803 = vadd.f32 %v1801, 1.0
        %v1804 = vrcp.pop %v1802
        %v1805 = vmul.f32 1.0, %v1804
        %v1806 = vrcp.pop %v1803
        %v1807 = vmul.f32 1.0, %v1806
        %v1808 = vmul.f32 %v1749, %v1805
        %v1809 = vmul.f32 %v1751, %v1807
        %v1810 = vmul.f32 %v1808, %v1790
        %v1811 = vmul.f32 %v1809, %v1792
        %v1812 = vpack.c.bf16 %v1810, %v1810
        %v1813 = vpack.c.bf16 %v1811, %v1811
        %v1814 = vld [vmem:[%s528] sm:$0xf]
        %v1815 = vld [vmem:[%s528 + $0x4] sm:$0xf]
        %v1816 = vld [vmem:[%s528 + $0x8] sm:$0xf]
        %v1817 = vld [vmem:[%s528 + $0xc] sm:$0xf]
        %v1818 = vld [vmem:[%s528 + $0x10] sm:$0xf]
        %v1819 = vld [vmem:[%s528 + $0x14] sm:$0xf]
        %v1820 = vld [vmem:[%s528 + $0x18] sm:$0xf]
        %v1821 = vld [vmem:[%s528 + $0x1c] sm:$0xf]
        %v1822 = vld [vmem:[%s528 + $0x20] sm:$0xf]
        %v1823 = vld [vmem:[%s528 + $0x24] sm:$0xf]
        %v1824 = vld [vmem:[%s528 + $0x28] sm:$0xf]
        %v1825 = vld [vmem:[%s528 + $0x2c] sm:$0xf]
        %v1826 = vld [vmem:[%s528 + $0x30] sm:$0xf]
        %v1827 = vld [vmem:[%s528 + $0x34] sm:$0xf]
        %v1828 = vld [vmem:[%s528 + $0x38] sm:$0xf]
        %v1829 = vld [vmem:[%s528 + $0x3c] sm:$0xf]
        %v1830 = vld [vmem:[%s528 + $0x40] sm:$0xf]
        %v1831 = vld [vmem:[%s528 + $0x44] sm:$0xf]
        %v1832 = vld [vmem:[%s528 + $0x48] sm:$0xf]
        %v1833 = vld [vmem:[%s528 + $0x4c] sm:$0xf]
        %v1834 = vld [vmem:[%s528 + $0x50] sm:$0xf]
        %v1835 = vld [vmem:[%s528 + $0x54] sm:$0xf]
        %v1836 = vld [vmem:[%s528 + $0x58] sm:$0xf]
        %v1837 = vld [vmem:[%s528 + $0x5c] sm:$0xf]
        %v1838 = vld [vmem:[%s528 + $0x60] sm:$0xf]
        %v1839 = vld [vmem:[%s528 + $0x64] sm:$0xf]
        %v1840 = vld [vmem:[%s528 + $0x68] sm:$0xf]
        %v1841 = vld [vmem:[%s528 + $0x6c] sm:$0xf]
        %v1842 = vld [vmem:[%s528 + $0x70] sm:$0xf]
        %v1843 = vld [vmem:[%s528 + $0x74] sm:$0xf]
        %v1844 = vld [vmem:[%s528 + $0x78] sm:$0xf]
        %v1845 = vld [vmem:[%s528 + $0x7c] sm:$0xf]
        %v1878 = vunpack.c.l.b16 %v1814
        %v1879 = vunpack.c.l.b16 %v1815
        %v1880 = vunpack.c.l.b16 %v1816
        %v1881 = vunpack.c.l.b16 %v1817
        %v1882 = vunpack.c.l.b16 %v1818
        %v1883 = vunpack.c.l.b16 %v1819
        %v1884 = vunpack.c.l.b16 %v1820
        %v1885 = vunpack.c.l.b16 %v1821
        %v1886 = vunpack.c.l.b16 %v1822
        %v1887 = vunpack.c.l.b16 %v1823
        %v1888 = vunpack.c.l.b16 %v1824
        %v1889 = vunpack.c.l.b16 %v1825
        %v1890 = vunpack.c.l.b16 %v1826
        %v1891 = vunpack.c.l.b16 %v1827
        %v1892 = vunpack.c.l.b16 %v1828
        %v1893 = vunpack.c.l.b16 %v1829
        %v1894 = vunpack.c.l.b16 %v1830
        %v1895 = vunpack.c.l.b16 %v1831
        %v1896 = vunpack.c.l.b16 %v1832
        %v1897 = vunpack.c.l.b16 %v1833
        %v1898 = vunpack.c.l.b16 %v1834
        %v1899 = vunpack.c.l.b16 %v1835
        %v1900 = vunpack.c.l.b16 %v1836
        %v1901 = vunpack.c.l.b16 %v1837
        %v1902 = vunpack.c.l.b16 %v1838
        %v1903 = vunpack.c.l.b16 %v1839
        %v1904 = vunpack.c.l.b16 %v1840
        %v1905 = vunpack.c.l.b16 %v1841
        %v1906 = vunpack.c.l.b16 %v1842
        %v1907 = vunpack.c.l.b16 %v1843
        %v1908 = vunpack.c.l.b16 %v1844
        %v1909 = vunpack.c.l.b16 %v1845
        %v1910 = vpack.c.b16 %v1879, %v1878
        %v1911 = vpack.c.b16 %v1881, %v1880
        %v1912 = vpack.c.b16 %v1883, %v1882
        %v1913 = vpack.c.b16 %v1885, %v1884
        %v1914 = vpack.c.b16 %v1887, %v1886
        %v1915 = vpack.c.b16 %v1889, %v1888
        %v1916 = vpack.c.b16 %v1891, %v1890
        %v1917 = vpack.c.b16 %v1893, %v1892
        %v1918 = vpack.c.b16 %v1895, %v1894
        %v1919 = vpack.c.b16 %v1897, %v1896
        %v1920 = vpack.c.b16 %v1899, %v1898
        %v1921 = vpack.c.b16 %v1901, %v1900
        %v1922 = vpack.c.b16 %v1903, %v1902
        %v1923 = vpack.c.b16 %v1905, %v1904
        %v1924 = vpack.c.b16 %v1907, %v1906
        %v1925 = vpack.c.b16 %v1909, %v1908
        %1942 = vmatprep.subr.bf16.mxu0 0
        %1943 = vmatpush1.bf16.msra.mxu0 %v1917
        %1944 = vmatprep.subr.bf16.mxu0 0
        %1945 = vmatpush1.bf16.msra.mxu0 %v1916
        %1946 = vmatprep.subr.bf16.mxu0 0
        %1947 = vmatpush1.bf16.msra.mxu0 %v1915
        %1948 = vmatprep.subr.bf16.mxu0 0
        %1949 = vmatpush1.bf16.msra.mxu0 %v1914
        %1950 = vmatprep.subr.bf16.mxu0 0
        %1951 = vmatpush1.bf16.msra.mxu0 %v1913
        %1952 = vmatprep.subr.bf16.mxu0 0
        %1953 = vmatpush1.bf16.msra.mxu0 %v1912
        %1954 = vmatprep.subr.bf16.mxu0 0
        %1955 = vmatpush1.bf16.msra.mxu0 %v1911
        %1956 = vmatprep.subr.bf16.mxu0 0
        %1957 = vmatpush1.bf16.msra.mxu0 %v1910
        %1958 = vmatprep.subr.bf16.mxu0 0
        %1959 = vmatpush2.bf16.msra.mxu0 %v1925
        %1960 = vmatprep.subr.bf16.mxu0 0
        %1961 = vmatpush2.bf16.msra.mxu0 %v1924
        %1962 = vmatprep.subr.bf16.mxu0 0
        %1963 = vmatpush2.bf16.msra.mxu0 %v1923
        %1964 = vmatprep.subr.bf16.mxu0 0
        %1965 = vmatpush2.bf16.msra.mxu0 %v1922
        %1966 = vmatprep.subr.bf16.mxu0 0
        %1967 = vmatpush2.bf16.msra.mxu0 %v1921
        %1968 = vmatprep.subr.bf16.mxu0 0
        %1969 = vmatpush2.bf16.msra.mxu0 %v1920
        %1970 = vmatprep.subr.bf16.mxu0 0
        %1971 = vmatpush2.bf16.msra.mxu0 %v1919
        %1972 = vmatprep.subr.bf16.mxu0 0
        %1973 = vmatpush2.bf16.msra.mxu0 %v1918
        %1974 = vmatprep.mubr.bf16.mxu0 %v1813
        %1975 = vmatmul.mubr.bf16.gmra.mxu0 %v1812
        %v1976 = vpop.f32.mrf.mxu0
        %v1977 = vadd.f32 0.0, %v1976
        %v1978 = vpop.f32.mrf.mxu0
        %v1979 = vpop.f32.mrf.mxu0
        %v1980 = vpop.f32.mrf.mxu0
        %1981 = vdwg.mxu0
        %v1982 = vadd.f32 %v1505, %v1977
        %1983 = vst [vmem:[#allocation2] sm:$0xff] %v1982
        %p1984 = scmp.eq.s32.totalorder %s31, 1
        // Predicated region
        $region73: #{transformer_forward.1} parent=67 // pred_check
          %p1985 = pneg %p1984
        $region74: #{transformer_forward.1} parent=67 // pred_check_branch
          %1987 = sbr.rel (%p1985) target = $region76
        $region75: #{transformer_forward.1} parent=67 // pred_region
          %v1988 = vmul.f32 %v1982, %v1982
          %1989 = vadd.xlane.f32.xlu0 %v1988
          %v1990 = vpop.xlane.xlu0 %1989
          %v1991 = vmul.f32 %v1990, %v540
          %v1992 = vadd.f32 %v1991, 1e-05
          %v1993 = vrsqrt.pop %v1992
          %v1994 = vmul.f32 %v1982, %v1993
          %v1995 = vld [vmem:[%s10] sm:$0x1]
          %v1997 = vlaneseq
          %v1998 = vshrl.u32 %v1997, 7
          %v1999 = vsub.s32 0, %v1998
          %v2000 = vrot.slane %v1995, %v1999
          %v2002 = vmul.f32 %v1994, %v2000
          %v2003 = vpack.c.bf16 %v2002, %v2002
          %v2004 = vld [vmem:[%s11] sm:$0xff]
          %v2005 = vld [vmem:[%s11 + $0x8] sm:$0xff]
          %v2006 = vld [vmem:[%s11 + $0x10] sm:$0xff]
          %v2007 = vld [vmem:[%s11 + $0x18] sm:$0xff]
          %v2008 = vld [vmem:[%s11 + $0x20] sm:$0xff]
          %v2009 = vld [vmem:[%s11 + $0x28] sm:$0xff]
          %v2010 = vld [vmem:[%s11 + $0x30] sm:$0xff]
          %v2011 = vld [vmem:[%s11 + $0x38] sm:$0xff]
          %v2012 = vld [vmem:[%s11 + $0x40] sm:$0xff]
          %v2013 = vld [vmem:[%s11 + $0x48] sm:$0xff]
          %v2014 = vld [vmem:[%s11 + $0x50] sm:$0xff]
          %v2015 = vld [vmem:[%s11 + $0x58] sm:$0xff]
          %v2016 = vld [vmem:[%s11 + $0x60] sm:$0xff]
          %v2017 = vld [vmem:[%s11 + $0x68] sm:$0xff]
          %v2018 = vld [vmem:[%s11 + $0x70] sm:$0xff]
          %v2019 = vld [vmem:[%s11 + $0x78] sm:$0xff]
          %v2036 = vunpack.c.l.b16 %v2004
          %v2037 = vunpack.c.h.b16 %v2004
          %v2038 = vunpack.c.l.b16 %v2005
          %v2039 = vunpack.c.h.b16 %v2005
          %v2040 = vunpack.c.l.b16 %v2006
          %v2041 = vunpack.c.h.b16 %v2006
          %v2042 = vunpack.c.l.b16 %v2007
          %v2043 = vunpack.c.h.b16 %v2007
          %v2044 = vunpack.c.l.b16 %v2008
          %v2045 = vunpack.c.h.b16 %v2008
          %v2046 = vunpack.c.l.b16 %v2009
          %v2047 = vunpack.c.h.b16 %v2009
          %v2048 = vunpack.c.l.b16 %v2010
          %v2049 = vunpack.c.h.b16 %v2010
          %v2050 = vunpack.c.l.b16 %v2011
          %v2051 = vunpack.c.h.b16 %v2011
          %v2052 = vunpack.c.l.b16 %v2012
          %v2053 = vunpack.c.h.b16 %v2012
          %v2054 = vunpack.c.l.b16 %v2013
          %v2055 = vunpack.c.h.b16 %v2013
          %v2056 = vunpack.c.l.b16 %v2014
          %v2057 = vunpack.c.h.b16 %v2014
          %v2058 = vunpack.c.l.b16 %v2015
          %v2059 = vunpack.c.h.b16 %v2015
          %v2060 = vunpack.c.l.b16 %v2016
          %v2061 = vunpack.c.h.b16 %v2016
          %v2062 = vunpack.c.l.b16 %v2017
          %v2063 = vunpack.c.h.b16 %v2017
          %v2064 = vunpack.c.l.b16 %v2018
          %v2065 = vunpack.c.h.b16 %v2018
          %v2066 = vunpack.c.l.b16 %v2019
          %v2067 = vunpack.c.h.b16 %v2019
          %v2068 = vpack.c.b16 %v2038, %v2036
          %v2069 = vpack.c.b16 %v2039, %v2037
          %v2070 = vpack.c.b16 %v2042, %v2040
          %v2071 = vpack.c.b16 %v2043, %v2041
          %v2072 = vpack.c.b16 %v2046, %v2044
          %v2073 = vpack.c.b16 %v2047, %v2045
          %v2074 = vpack.c.b16 %v2050, %v2048
          %v2075 = vpack.c.b16 %v2051, %v2049
          %v2076 = vpack.c.b16 %v2054, %v2052
          %v2077 = vpack.c.b16 %v2055, %v2053
          %v2078 = vpack.c.b16 %v2058, %v2056
          %v2079 = vpack.c.b16 %v2059, %v2057
          %v2080 = vpack.c.b16 %v2062, %v2060
          %v2081 = vpack.c.b16 %v2063, %v2061
          %v2082 = vpack.c.b16 %v2066, %v2064
          %v2083 = vpack.c.b16 %v2067, %v2065
          %2100 = vmatprep.subr.bf16.mxu0 %v2083
          %2101 = vmatpush1.bf16.msra.mxu0 %v2082
          %2102 = vmatprep.subr.bf16.mxu0 %v2081
          %2103 = vmatpush1.bf16.msra.mxu0 %v2080
          %2104 = vmatprep.subr.bf16.mxu0 %v2079
          %2105 = vmatpush1.bf16.msra.mxu0 %v2078
          %2106 = vmatprep.subr.bf16.mxu0 %v2077
          %2107 = vmatpush1.bf16.msra.mxu0 %v2076
          %2108 = vmatprep.subr.bf16.mxu0 %v2075
          %2109 = vmatpush1.bf16.msra.mxu0 %v2074
          %2110 = vmatprep.subr.bf16.mxu0 %v2073
          %2111 = vmatpush1.bf16.msra.mxu0 %v2072
          %2112 = vmatprep.subr.bf16.mxu0 %v2071
          %2113 = vmatpush1.bf16.msra.mxu0 %v2070
          %2114 = vmatprep.subr.bf16.mxu0 %v2069
          %2115 = vmatpush1.bf16.msra.mxu0 %v2068
          %2116 = vmatprep.subr.bf16.mxu0 0
          %2117 = vmatpush2.bf16.msra.mxu0 0
          %2118 = vmatprep.subr.bf16.mxu0 0
          %2119 = vmatpush2.bf16.msra.mxu0 0
          %2120 = vmatprep.subr.bf16.mxu0 0
          %2121 = vmatpush2.bf16.msra.mxu0 0
          %2122 = vmatprep.subr.bf16.mxu0 0
          %2123 = vmatpush2.bf16.msra.mxu0 0
          %2124 = vmatprep.subr.bf16.mxu0 0
          %2125 = vmatpush2.bf16.msra.mxu0 0
          %2126 = vmatprep.subr.bf16.mxu0 0
          %2127 = vmatpush2.bf16.msra.mxu0 0
          %2128 = vmatprep.subr.bf16.mxu0 0
          %2129 = vmatpush2.bf16.msra.mxu0 0
          %2130 = vmatprep.subr.bf16.mxu0 0
          %2131 = vmatpush2.bf16.msra.mxu0 0
          %2132 = vmatprep.mubr.bf16.mxu0 0
          %2133 = vmatmul.mubr.bf16.gmra.mxu0 %v2003
          %v2134 = vpop.f32.mrf.mxu0
          %v2135 = vadd.f32 0.0, %v2134
          %v2136 = vpop.f32.mrf.mxu0
          %v2137 = vadd.f32 0.0, %v2136
          %v2138 = vpop.f32.mrf.mxu0
          %v2139 = vpop.f32.mrf.mxu0
          %2140 = vdwg.mxu0
          %2141 = vst [vmem:[%s498] sm:$0xff] %v2135
          %2142 = vst [vmem:[%s498 + $0x8] sm:$0xff] %v2137
        $region76: #{transformer_forward.1} parent=67 // pred_fallthru
          _
        %s2143 = sand.u32 %s333, 1
        %s2144 = scalar_lea.sflag [#allocation4], %s2143
        %s2145 = sand.u32 %s333, 1
        %s2146 = smul.addr %s2145, 16
        %s2147 = scalar_lea.vmem [#allocation3], %s2146
        // Predicated region
        $region77: #{transformer_forward.1} parent=67 // pred_check
          %p2148 = pneg %p343
        $region78: #{transformer_forward.1} parent=67 // pred_check_branch
          %2150 = sbr.rel (%p2148) target = $region80
        $region79: #{transformer_forward.1} parent=67 // pred_region
          %s2152 = ssub.s32 256, 256
          %2153 = vsyncadd %s2144, %s2152
          %s2154 = smul.addr %s30, 2
          %s2155 = smul.addr %s2154, 128
          %s2156 = scalar_lea.hbm %s12, %s2155
          %s2158 = sshll.u32 %s2147, 4
          %s2159 = int_to_ptr.vmem [resolvable:$true] %s2158
          %2161 = dma.vmem_to_hbm [thread:$0]  %s2159, 256, %s2156, %s2144
        $region80: #{transformer_forward.1} parent=67 // pred_fallthru
          _
      $region68: #{transformer_forward.1} parent=5 // pred_fallthru
        _
      %p2162 = scmp.le.s32.totalorder 2, %s21
      // Predicated region
      $region81: #{transformer_forward.1} parent=5 // pred_check
        %p2163 = pneg %p2162
      $region82: #{transformer_forward.1} parent=5 // pred_check_branch
        %2165 = sbr.rel (%p2163) target = $region84
      $region83: #{transformer_forward.1} parent=5 // pred_region
        %s2166 = ssub.s32 %s21, 2
        // Predicated region
        $region85: #{transformer_forward.1} parent=83 // pred_check
          %p2167 = pneg %p349
        $region86: #{transformer_forward.1} parent=83 // pred_check_branch
          %2169 = sbr.rel (%p2167) target = $region88
        $region87: #{transformer_forward.1} parent=83 // pred_region
          %s2170 = sand.u32 %s334, 1
          %s2171 = scalar_lea.sflag [#allocation4], %s2170
          %s2172 = sand.u32 %s334, 1
          %s2173 = smul.addr %s2172, 16
          %s2174 = scalar_lea.vmem [#allocation3], %s2173
          %2175 = dma.done %s2171, 256
        $region88: #{transformer_forward.1} parent=83 // pred_fallthru
          _
      $region84: #{transformer_forward.1} parent=5 // pred_fallthru
        _
    $region6: #{transformer_forward.1} parent=1 // loop_footer
      %s25 = sadd.s32 1, %s21
    $region7: #{transformer_forward.1} parent=1 // loop_footer_branch
      %20 = sbr.rel target = $region3
    $region8: #{transformer_forward.1} parent=1 // loop_exit
      _
    %2176 = vsyncpa [#allocation4], 1
    %s2177 = scalar_lea.sflag [#allocation4], 1
    %2178 = vsyncpa %s2177, 1

</llo_original>
